<compile_context>
chip_gen: v5e
topology: v5e:2x2
jax: 0.10.0
libtpu: 0.0.40
codegen_flags: <defaults>
</compile_context>

<pallas_src>
import math
import functools

import jax
import jax.numpy as jnp
from jax.experimental import pallas as pl
from jax.experimental.pallas import tpu as pltpu


def mha_kernel(q_ref, k_ref, v_ref,
               wq_ref, bq_ref, wk_ref, bk_ref, wv_ref, bv_ref,
               wo_ref, bo_ref,
               out_ref, attn_ref,
               *, heads, d_k, scale, compute_dtype):
    # One (batch, query-tile) cell per grid step.
    xq = q_ref[0]   # (tq, D)  compute_dtype
    xk = k_ref[0]   # (S,  D)  compute_dtype
    xv = v_ref[0]   # (S,  D)  compute_dtype

    acc = None  # f32 accumulator for the folded output projection, (tq, D)
    for h in range(heads):  # static unroll; small H. No lane-slicing of tiles.
        # Per-head projections: weights are already (D, d_k), so y = x @ w_h.
        # Contraction is over the full D width; bias add + scale stay in f32.
        qh = ((jnp.dot(xq, wq_ref[h], preferred_element_type=jnp.float32)
               + bq_ref[h]) * scale).astype(compute_dtype)          # (tq, d_k)
        kh = (jnp.dot(xk, wk_ref[h], preferred_element_type=jnp.float32)
              + bk_ref[h]).astype(compute_dtype)                    # (S, d_k)
        vh = (jnp.dot(xv, wv_ref[h], preferred_element_type=jnp.float32)
              + bv_ref[h]).astype(compute_dtype)                    # (S, d_k)

        # scores = qh @ kh^T, expressed as a contraction of the last dims so
        # Mosaic feeds the transposed operand to the MXU natively.
        s = jax.lax.dot_general(qh, kh, (((1,), (1,)), ((), ())),
                                preferred_element_type=jnp.float32)  # (tq, S)

        # TODO(synk): optional `mask` path (masked_fill with -1e9) not wired in.

        # logistic(s) = 1 / (1 + 20 * e^{-s}); exp and approx reciprocal both
        # run on the EUP slot (f32 throughout).
        w = pl.reciprocal(1.0 + 20.0 * jnp.exp(-s), approx=True)    # (tq, S)
        attn_ref[0, h] = w

        oh = jnp.dot(w.astype(compute_dtype), vh,
                     preferred_element_type=jnp.float32).astype(compute_dtype)

        # Fold the output projection per head: concat @ Wo^T == sum_h oh @ Wo_h.
        part = jnp.dot(oh, wo_ref[h], preferred_element_type=jnp.float32)
        acc = part if acc is None else acc + part

    out_ref[0] = (acc + bo_ref[...]).astype(out_ref.dtype)


def multi_head_attention(q, k, v, params, *, heads, q_tile=None,
                         compute_dtype=jnp.float32):
    """q,k,v: (B, S, D) float32. Returns (output (B,S,D) f32, weights (B,H,S,S) f32).

    compute_dtype: dtype fed to the MXU matmuls (use jnp.bfloat16 on v6e/v7x);
    scores, logistic, bias adds and accumulation always stay float32.
    """
    B, S, D = q.shape
    d_k = D // heads
    assert heads * d_k == D

    wq, bq, wk, bk, wv, bv, wo, bo = params

    # ---- one-time XLA-side weight prep: pre-transpose + per-head split ------
    def split_proj(w):   # nn.Linear weight (D, D) -> (H, D, d_k); y_h = x @ w_h
        return jnp.transpose(w.reshape(heads, d_k, D), (0, 2, 1)).astype(compute_dtype)

    def split_bias(b):   # (1, D) -> (H, 1, d_k); kept f32 (added to f32 acc)
        return b.reshape(heads, 1, d_k).astype(jnp.float32)

    wq_h, wk_h, wv_h = split_proj(wq), split_proj(wk), split_proj(wv)
    bq_h, bk_h, bv_h = split_bias(bq), split_bias(bk), split_bias(bv)
    wo_h = wo.T.reshape(heads, d_k, D).astype(compute_dtype)  # out = sum_h o_h @ wo_h
    bo_f = bo.reshape(1, D).astype(jnp.float32)

    qc, kc, vc = (t.astype(compute_dtype) for t in (q, k, v))

    # ---- query tiling: bounds VMEM (important on v7x's 64 MiB) and deepens
    # the pipeline; both grid axes are "parallel" for multi-core sharding. ----
    if q_tile is None:
        q_tile = 128 if S % 128 == 0 else S
    assert S % q_tile == 0 and (q_tile == S or q_tile % 8 == 0)
    n_q = S // q_tile

    x_full = lambda b, qi: (b, 0, 0)     # K/V: whole sequence, resident per batch
    wmap3 = lambda b, qi: (0, 0, 0)      # constant weights (fetched once)
    wmap2 = lambda b, qi: (0, 0)

    kernel = functools.partial(mha_kernel, heads=heads, d_k=d_k,
                               scale=1.0 / math.sqrt(d_k),
                               compute_dtype=compute_dtype)

    cost = pl.CostEstimate(
        flops=int(B * (8 * S * D * D + 4 * S * S * D)),
        transcendentals=int(B * heads * S * S),
        bytes_accessed=int(sum(t.size * t.dtype.itemsize for t in
                               (qc, kc, vc, wq_h, wk_h, wv_h, wo_h,
                                bq_h, bk_h, bv_h, bo_f))
                           + B * S * D * 4 + B * heads * S * S * 4),
    )

    out, attn = pl.pallas_call(
        kernel,
        out_shape=(jax.ShapeDtypeStruct((B, S, D), jnp.float32),
                   jax.ShapeDtypeStruct((B, heads, S, S), jnp.float32)),
        grid_spec=pltpu.PrefetchScalarGridSpec(
            num_scalar_prefetch=0,
            grid=(B, n_q),
            in_specs=[
                pl.BlockSpec((1, q_tile, D), lambda b, qi: (b, qi, 0)),  # q tile
                pl.BlockSpec((1, S, D), x_full),                          # k
                pl.BlockSpec((1, S, D), x_full),                          # v
                pl.BlockSpec((heads, D, d_k), wmap3),                     # Wq^T per head
                pl.BlockSpec((heads, 1, d_k), wmap3),                     # bq per head
                pl.BlockSpec((heads, D, d_k), wmap3),                     # Wk^T per head
                pl.BlockSpec((heads, 1, d_k), wmap3),                     # bk per head
                pl.BlockSpec((heads, D, d_k), wmap3),                     # Wv^T per head
                pl.BlockSpec((heads, 1, d_k), wmap3),                     # bv per head
                pl.BlockSpec((heads, d_k, D), wmap3),                     # Wo^T per head
                pl.BlockSpec((1, D), wmap2),                              # bo
            ],
            out_specs=[
                pl.BlockSpec((1, q_tile, D), lambda b, qi: (b, qi, 0)),
                pl.BlockSpec((1, heads, q_tile, S), lambda b, qi: (b, 0, qi, 0)),
            ],
        ),
        compiler_params=pltpu.CompilerParams(
            dimension_semantics=("parallel", "parallel")),
        cost_estimate=cost,
    )(qc, kc, vc, wq_h, bq_h, wk_h, bk_h, wv_h, bv_h, wo_h, bo_f)
    return out, attn


def reference(q, k, v, params, *, heads):
    """Pure-JAX reference mirroring the PyTorch forward."""
    B, S, D = q.shape
    d_k = D // heads
    wq, bq, wk, bk, wv, bv, wo, bo = params
    Q = q @ wq.T + bq[0]
    K = k @ wk.T + bk[0]
    V = v @ wv.T + bv[0]
    Q = Q.reshape(B, S, heads, d_k).transpose(0, 2, 1, 3)
    K = K.reshape(B, S, heads, d_k).transpose(0, 2, 1, 3)
    V = V.reshape(B, S, heads, d_k).transpose(0, 2, 1, 3)
    scores = jnp.einsum('bhqd,bhkd->bhqk', Q, K) / math.sqrt(d_k)
    w = 1.0 / (1.0 + 20.0 * jnp.exp(-scores))
    o = jnp.einsum('bhqk,bhkd->bhqd', w, V)
    concat = o.transpose(0, 2, 1, 3).reshape(B, S, D)
    return concat @ wo.T + bo[0], w


if __name__ == "__main__":
    B, S, D, H = 2, 8, 32, 4

    key = jax.random.PRNGKey(0)
    keys = jax.random.split(key, 12)

    def lin_init(kw, kb, fan_in):
        bound = 1.0 / math.sqrt(fan_in)
        w = jax.random.uniform(kw, (D, D), jnp.float32, -bound, bound)
        b = jax.random.uniform(kb, (1, D), jnp.float32, -bound, bound)
        return w, b

    wq, bq = lin_init(keys[0], keys[1], D)
    wk, bk = lin_init(keys[2], keys[3], D)
    wv, bv = lin_init(keys[4], keys[5], D)
    wo, bo = lin_init(keys[6], keys[7], D)
    params = (wq, bq, wk, bk, wv, bv, wo, bo)

    q = jax.random.normal(keys[8], (B, S, D), jnp.float32)
    k = jax.random.normal(keys[9], (B, S, D), jnp.float32)
    v = jax.random.normal(keys[10], (B, S, D), jnp.float32)

    out_ref, w_ref = reference(q, k, v, params, heads=H)

    # ---- f32 path (single query tile per batch element) --------------------
    # Tolerance absorbs the EUP approx-reciprocal in the logistic (~1e-3 rel).
    out, w = multi_head_attention(q, k, v, params, heads=H)
    jax.block_until_ready((out, w))
    assert jnp.allclose(out, out_ref, atol=2e-2, rtol=2e-2), "f32 output mismatch"
    assert jnp.allclose(w, w_ref, atol=2e-2, rtol=2e-2), "f32 attn-weight mismatch"

    # ---- bf16-MXU path with query tiling (exercises the (B, S//tq) grid) ---
    # Loose tolerances: bf16 matmul operands give ~1% relative error; the f32
    # run above is the tight correctness check of the kernel logic.
    S2 = 128
    q2 = jax.random.normal(keys[11], (B, S2, D), jnp.float32)
    k2 = jax.random.normal(keys[9], (B, S2, D), jnp.float32)
    v2 = jax.random.normal(keys[10], (B, S2, D), jnp.float32)
    out2_ref, w2_ref = reference(q2, k2, v2, params, heads=H)

    out2, w2 = multi_head_attention(q2, k2, v2, params, heads=H,
                                    q_tile=64, compute_dtype=jnp.bfloat16)
    jax.block_until_ready((out2, w2))
    assert jnp.allclose(out2, out2_ref, atol=2.5e-1, rtol=1e-1), "bf16 output mismatch"
    assert jnp.allclose(w2, w2_ref, atol=8e-2, rtol=5e-2), "bf16 attn-weight mismatch"

    print("KERNEL_OK")
</pallas_src>

<mosaic_0001>
module attributes {stable_mosaic.version = 11 : i64} {
  func.func @mha_kernel(%arg0: i32, %arg1: i32, %arg2: memref<1x8x32xf32, #tpu.memory_space<vmem>>, %arg3: memref<1x8x32xf32, #tpu.memory_space<vmem>>, %arg4: memref<1x8x32xf32, #tpu.memory_space<vmem>>, %arg5: memref<4x32x8xf32, #tpu.memory_space<vmem>>, %arg6: memref<4x1x8xf32, #tpu.memory_space<vmem>>, %arg7: memref<4x32x8xf32, #tpu.memory_space<vmem>>, %arg8: memref<4x1x8xf32, #tpu.memory_space<vmem>>, %arg9: memref<4x32x8xf32, #tpu.memory_space<vmem>>, %arg10: memref<4x1x8xf32, #tpu.memory_space<vmem>>, %arg11: memref<4x8x32xf32, #tpu.memory_space<vmem>>, %arg12: memref<1x32xf32, #tpu.memory_space<vmem>>, %arg13: memref<1x8x32xf32, #tpu.memory_space<vmem>>, %arg14: memref<1x4x8x8xf32, #tpu.memory_space<vmem>>) attributes {dimension_semantics = [#tpu.dimension_semantics<parallel>, #tpu.dimension_semantics<parallel>], iteration_bounds = array<i64: 2, 1>, scalar_prefetch = 0 : i64, scratch_operands = 0 : i64, tpu.core_type = #tpu.core_type<tc>, window_params = [{transform_indices = @transform_0, window_bounds = array<i64: 1, 8, 32>}, {transform_indices = @transform_1, window_bounds = array<i64: 1, 8, 32>}, {transform_indices = @transform_2, window_bounds = array<i64: 1, 8, 32>}, {pipeline_mode = #tpu.pipeline_mode<synchronous>, transform_indices = @transform_3, window_bounds = array<i64: 4, 32, 8>}, {pipeline_mode = #tpu.pipeline_mode<synchronous>, transform_indices = @transform_4, window_bounds = array<i64: 4, 1, 8>}, {pipeline_mode = #tpu.pipeline_mode<synchronous>, transform_indices = @transform_5, window_bounds = array<i64: 4, 32, 8>}, {pipeline_mode = #tpu.pipeline_mode<synchronous>, transform_indices = @transform_6, window_bounds = array<i64: 4, 1, 8>}, {pipeline_mode = #tpu.pipeline_mode<synchronous>, transform_indices = @transform_7, window_bounds = array<i64: 4, 32, 8>}, {pipeline_mode = #tpu.pipeline_mode<synchronous>, transform_indices = @transform_8, window_bounds = array<i64: 4, 1, 8>}, {pipeline_mode = #tpu.pipeline_mode<synchronous>, transform_indices = @transform_9, window_bounds = array<i64: 4, 8, 32>}, {pipeline_mode = #tpu.pipeline_mode<synchronous>, transform_indices = @transform_10, window_bounds = array<i64: 1, 32>}, {transform_indices = @transform_11, window_bounds = array<i64: 1, 8, 32>}, {transform_indices = @transform_12, window_bounds = array<i64: 1, 4, 8, 8>}]} {
    %c0 = arith.constant 0 : index
    %c0_0 = arith.constant 0 : index
    %c0_1 = arith.constant 0 : index
    %0 = vector.load %arg2[%c0, %c0_0, %c0_1] : memref<1x8x32xf32, #tpu.memory_space<vmem>>, vector<1x8x32xf32>
    %1 = vector.shape_cast %0 : vector<1x8x32xf32> to vector<8x32xf32>
    %c0_2 = arith.constant 0 : index
    %c0_3 = arith.constant 0 : index
    %c0_4 = arith.constant 0 : index
    %2 = vector.load %arg3[%c0_2, %c0_3, %c0_4] : memref<1x8x32xf32, #tpu.memory_space<vmem>>, vector<1x8x32xf32>
    %3 = vector.shape_cast %2 : vector<1x8x32xf32> to vector<8x32xf32>
    %c0_5 = arith.constant 0 : index
    %c0_6 = arith.constant 0 : index
    %c0_7 = arith.constant 0 : index
    %4 = vector.load %arg4[%c0_5, %c0_6, %c0_7] : memref<1x8x32xf32, #tpu.memory_space<vmem>>, vector<1x8x32xf32>
    %5 = vector.shape_cast %4 : vector<1x8x32xf32> to vector<8x32xf32>
    %c0_8 = arith.constant 0 : index
    %c0_9 = arith.constant 0 : index
    %c0_10 = arith.constant 0 : index
    %6 = vector.load %arg5[%c0_8, %c0_9, %c0_10] : memref<4x32x8xf32, #tpu.memory_space<vmem>>, vector<1x32x8xf32>
    %7 = vector.shape_cast %6 : vector<1x32x8xf32> to vector<32x8xf32>
    %cst = arith.constant dense<0.000000e+00> : vector<8x8xf32>
    %8 = tpu.matmul %1, %7, %cst {dimension_numbers = #tpu.dot_dimension_numbers<[1], [0], [0], [1], [0, 0, 1, 1], [], []>} : vector<8x32xf32>, vector<32x8xf32>, vector<8x8xf32> -> vector<8x8xf32>
    %c0_11 = arith.constant 0 : index
    %c0_12 = arith.constant 0 : index
    %c0_13 = arith.constant 0 : index
    %9 = vector.load %arg6[%c0_11, %c0_12, %c0_13] : memref<4x1x8xf32, #tpu.memory_space<vmem>>, vector<1x1x8xf32>
    %10 = vector.shape_cast %9 : vector<1x1x8xf32> to vector<1x8xf32>
    %11 = vector.broadcast %10 : vector<1x8xf32> to vector<8x8xf32>
    %12 = arith.addf %8, %11 : vector<8x8xf32>
    %cst_14 = arith.constant 0.353553385 : f32
    %13 = vector.broadcast %cst_14 : f32 to vector<8x8xf32>
    %14 = arith.mulf %12, %13 : vector<8x8xf32>
    %c0_15 = arith.constant 0 : index
    %c0_16 = arith.constant 0 : index
    %c0_17 = arith.constant 0 : index
    %15 = vector.load %arg7[%c0_15, %c0_16, %c0_17] : memref<4x32x8xf32, #tpu.memory_space<vmem>>, vector<1x32x8xf32>
    %16 = vector.shape_cast %15 : vector<1x32x8xf32> to vector<32x8xf32>
    %cst_18 = arith.constant dense<0.000000e+00> : vector<8x8xf32>
    %17 = tpu.matmul %3, %16, %cst_18 {dimension_numbers = #tpu.dot_dimension_numbers<[1], [0], [0], [1], [0, 0, 1, 1], [], []>} : vector<8x32xf32>, vector<32x8xf32>, vector<8x8xf32> -> vector<8x8xf32>
    %c0_19 = arith.constant 0 : index
    %c0_20 = arith.constant 0 : index
    %c0_21 = arith.constant 0 : index
    %18 = vector.load %arg8[%c0_19, %c0_20, %c0_21] : memref<4x1x8xf32, #tpu.memory_space<vmem>>, vector<1x1x8xf32>
    %19 = vector.shape_cast %18 : vector<1x1x8xf32> to vector<1x8xf32>
    %20 = vector.broadcast %19 : vector<1x8xf32> to vector<8x8xf32>
    %21 = arith.addf %17, %20 : vector<8x8xf32>
    %c0_22 = arith.constant 0 : index
    %c0_23 = arith.constant 0 : index
    %c0_24 = arith.constant 0 : index
    %22 = vector.load %arg9[%c0_22, %c0_23, %c0_24] : memref<4x32x8xf32, #tpu.memory_space<vmem>>, vector<1x32x8xf32>
    %23 = vector.shape_cast %22 : vector<1x32x8xf32> to vector<32x8xf32>
    %cst_25 = arith.constant dense<0.000000e+00> : vector<8x8xf32>
    %24 = tpu.matmul %5, %23, %cst_25 {dimension_numbers = #tpu.dot_dimension_numbers<[1], [0], [0], [1], [0, 0, 1, 1], [], []>} : vector<8x32xf32>, vector<32x8xf32>, vector<8x8xf32> -> vector<8x8xf32>
    %c0_26 = arith.constant 0 : index
    %c0_27 = arith.constant 0 : index
    %c0_28 = arith.constant 0 : index
    %25 = vector.load %arg10[%c0_26, %c0_27, %c0_28] : memref<4x1x8xf32, #tpu.memory_space<vmem>>, vector<1x1x8xf32>
    %26 = vector.shape_cast %25 : vector<1x1x8xf32> to vector<1x8xf32>
    %27 = vector.broadcast %26 : vector<1x8xf32> to vector<8x8xf32>
    %28 = arith.addf %24, %27 : vector<8x8xf32>
    %cst_29 = arith.constant dense<0.000000e+00> : vector<8x8xf32>
    %29 = tpu.matmul %14, %21, %cst_29 {dimension_numbers = #tpu.dot_dimension_numbers<[1], [1], [0], [0], [0, 0, 1, 0], [], []>} : vector<8x8xf32>, vector<8x8xf32>, vector<8x8xf32> -> vector<8x8xf32>
    %cst_30 = arith.constant 0.000000e+00 : f32
    %30 = vector.broadcast %cst_30 : f32 to vector<8x8xf32>
    %31 = arith.subf %30, %29 : vector<8x8xf32>
    %32 = math.exp %31 : vector<8x8xf32>
    %cst_31 = arith.constant 2.000000e+01 : f32
    %33 = vector.broadcast %cst_31 : f32 to vector<8x8xf32>
    %34 = arith.mulf %33, %32 : vector<8x8xf32>
    %cst_32 = arith.constant 1.000000e+00 : f32
    %35 = vector.broadcast %cst_32 : f32 to vector<8x8xf32>
    %36 = arith.addf %35, %34 : vector<8x8xf32>
    %37 = tpu.reciprocal %36 {approx = true} : vector<8x8xf32> -> vector<8x8xf32>
    %c0_33 = arith.constant 0 : index
    %c0_34 = arith.constant 0 : index
    %c0_35 = arith.constant 0 : index
    %c0_36 = arith.constant 0 : index
    %38 = vector.load %arg14[%c0_33, %c0_34, %c0_35, %c0_36] : memref<1x4x8x8xf32, #tpu.memory_space<vmem>>, vector<1x1x8x8xf32>
    %39 = vector.shape_cast %38 : vector<1x1x8x8xf32> to vector<8x8xf32>
    %40 = vector.shape_cast %37 : vector<8x8xf32> to vector<1x1x8x8xf32>
    tpu.vector_store %arg14[%c0_33, %c0_34, %c0_35, %c0_36], %40 {strides = array<i32>} : memref<1x4x8x8xf32, #tpu.memory_space<vmem>>, vector<1x1x8x8xf32>,
    %cst_37 = arith.constant dense<0.000000e+00> : vector<8x8xf32>
    %41 = tpu.matmul %37, %28, %cst_37 {dimension_numbers = #tpu.dot_dimension_numbers<[1], [0], [0], [1], [0, 0, 1, 1], [], []>} : vector<8x8xf32>, vector<8x8xf32>, vector<8x8xf32> -> vector<8x8xf32>
    %c0_38 = arith.constant 0 : index
    %c0_39 = arith.constant 0 : index
    %c0_40 = arith.constant 0 : index
    %42 = vector.load %arg11[%c0_38, %c0_39, %c0_40] : memref<4x8x32xf32, #tpu.memory_space<vmem>>, vector<1x8x32xf32>
    %43 = vector.shape_cast %42 : vector<1x8x32xf32> to vector<8x32xf32>
    %cst_41 = arith.constant dense<0.000000e+00> : vector<8x32xf32>
    %44 = tpu.matmul %41, %43, %cst_41 {dimension_numbers = #tpu.dot_dimension_numbers<[1], [0], [0], [1], [0, 0, 1, 1], [], []>} : vector<8x8xf32>, vector<8x32xf32>, vector<8x32xf32> -> vector<8x32xf32>
    %c1 = arith.constant 1 : index
    %c0_42 = arith.constant 0 : index
    %c0_43 = arith.constant 0 : index
    %45 = vector.load %arg5[%c1, %c0_42, %c0_43] : memref<4x32x8xf32, #tpu.memory_space<vmem>>, vector<1x32x8xf32>
    %46 = vector.shape_cast %45 : vector<1x32x8xf32> to vector<32x8xf32>
    %cst_44 = arith.constant dense<0.000000e+00> : vector<8x8xf32>
    %47 = tpu.matmul %1, %46, %cst_44 {dimension_numbers = #tpu.dot_dimension_numbers<[1], [0], [0], [1], [0, 0, 1, 1], [], []>} : vector<8x32xf32>, vector<32x8xf32>, vector<8x8xf32> -> vector<8x8xf32>
    %c1_45 = arith.constant 1 : index
    %c0_46 = arith.constant 0 : index
    %c0_47 = arith.constant 0 : index
    %48 = vector.load %arg6[%c1_45, %c0_46, %c0_47] : memref<4x1x8xf32, #tpu.memory_space<vmem>>, vector<1x1x8xf32>
    %49 = vector.shape_cast %48 : vector<1x1x8xf32> to vector<1x8xf32>
    %50 = vector.broadcast %49 : vector<1x8xf32> to vector<8x8xf32>
    %51 = arith.addf %47, %50 : vector<8x8xf32>
    %cst_48 = arith.constant 0.353553385 : f32
    %52 = vector.broadcast %cst_48 : f32 to vector<8x8xf32>
    %53 = arith.mulf %51, %52 : vector<8x8xf32>
    %c1_49 = arith.constant 1 : index
    %c0_50 = arith.constant 0 : index
    %c0_51 = arith.constant 0 : index
    %54 = vector.load %arg7[%c1_49, %c0_50, %c0_51] : memref<4x32x8xf32, #tpu.memory_space<vmem>>, vector<1x32x8xf32>
    %55 = vector.shape_cast %54 : vector<1x32x8xf32> to vector<32x8xf32>
    %cst_52 = arith.constant dense<0.000000e+00> : vector<8x8xf32>
    %56 = tpu.matmul %3, %55, %cst_52 {dimension_numbers = #tpu.dot_dimension_numbers<[1], [0], [0], [1], [0, 0, 1, 1], [], []>} : vector<8x32xf32>, vector<32x8xf32>, vector<8x8xf32> -> vector<8x8xf32>
    %c1_53 = arith.constant 1 : index
    %c0_54 = arith.constant 0 : index
    %c0_55 = arith.constant 0 : index
    %57 = vector.load %arg8[%c1_53, %c0_54, %c0_55] : memref<4x1x8xf32, #tpu.memory_space<vmem>>, vector<1x1x8xf32>
    %58 = vector.shape_cast %57 : vector<1x1x8xf32> to vector<1x8xf32>
    %59 = vector.broadcast %58 : vector<1x8xf32> to vector<8x8xf32>
    %60 = arith.addf %56, %59 : vector<8x8xf32>
    %c1_56 = arith.constant 1 : index
    %c0_57 = arith.constant 0 : index
    %c0_58 = arith.constant 0 : index
    %61 = vector.load %arg9[%c1_56, %c0_57, %c0_58] : memref<4x32x8xf32, #tpu.memory_space<vmem>>, vector<1x32x8xf32>
    %62 = vector.shape_cast %61 : vector<1x32x8xf32> to vector<32x8xf32>
    %cst_59 = arith.constant dense<0.000000e+00> : vector<8x8xf32>
    %63 = tpu.matmul %5, %62, %cst_59 {dimension_numbers = #tpu.dot_dimension_numbers<[1], [0], [0], [1], [0, 0, 1, 1], [], []>} : vector<8x32xf32>, vector<32x8xf32>, vector<8x8xf32> -> vector<8x8xf32>
    %c1_60 = arith.constant 1 : index
    %c0_61 = arith.constant 0 : index
    %c0_62 = arith.constant 0 : index
    %64 = vector.load %arg10[%c1_60, %c0_61, %c0_62] : memref<4x1x8xf32, #tpu.memory_space<vmem>>, vector<1x1x8xf32>
    %65 = vector.shape_cast %64 : vector<1x1x8xf32> to vector<1x8xf32>
    %66 = vector.broadcast %65 : vector<1x8xf32> to vector<8x8xf32>
    %67 = arith.addf %63, %66 : vector<8x8xf32>
    %cst_63 = arith.constant dense<0.000000e+00> : vector<8x8xf32>
    %68 = tpu.matmul %53, %60, %cst_63 {dimension_numbers = #tpu.dot_dimension_numbers<[1], [1], [0], [0], [0, 0, 1, 0], [], []>} : vector<8x8xf32>, vector<8x8xf32>, vector<8x8xf32> -> vector<8x8xf32>
    %cst_64 = arith.constant 0.000000e+00 : f32
    %69 = vector.broadcast %cst_64 : f32 to vector<8x8xf32>
    %70 = arith.subf %69, %68 : vector<8x8xf32>
    %71 = math.exp %70 : vector<8x8xf32>
    %cst_65 = arith.constant 2.000000e+01 : f32
    %72 = vector.broadcast %cst_65 : f32 to vector<8x8xf32>
    %73 = arith.mulf %72, %71 : vector<8x8xf32>
    %cst_66 = arith.constant 1.000000e+00 : f32
    %74 = vector.broadcast %cst_66 : f32 to vector<8x8xf32>
    %75 = arith.addf %74, %73 : vector<8x8xf32>
    %76 = tpu.reciprocal %75 {approx = true} : vector<8x8xf32> -> vector<8x8xf32>
    %c0_67 = arith.constant 0 : index
    %c1_68 = arith.constant 1 : index
    %c0_69 = arith.constant 0 : index
    %c0_70 = arith.constant 0 : index
    %77 = vector.load %arg14[%c0_67, %c1_68, %c0_69, %c0_70] : memref<1x4x8x8xf32, #tpu.memory_space<vmem>>, vector<1x1x8x8xf32>
    %78 = vector.shape_cast %77 : vector<1x1x8x8xf32> to vector<8x8xf32>
    %79 = vector.shape_cast %76 : vector<8x8xf32> to vector<1x1x8x8xf32>
    tpu.vector_store %arg14[%c0_67, %c1_68, %c0_69, %c0_70], %79 {strides = array<i32>} : memref<1x4x8x8xf32, #tpu.memory_space<vmem>>, vector<1x1x8x8xf32>,
    %cst_71 = arith.constant dense<0.000000e+00> : vector<8x8xf32>
    %80 = tpu.matmul %76, %67, %cst_71 {dimension_numbers = #tpu.dot_dimension_numbers<[1], [0], [0], [1], [0, 0, 1, 1], [], []>} : vector<8x8xf32>, vector<8x8xf32>, vector<8x8xf32> -> vector<8x8xf32>
    %c1_72 = arith.constant 1 : index
    %c0_73 = arith.constant 0 : index
    %c0_74 = arith.constant 0 : index
    %81 = vector.load %arg11[%c1_72, %c0_73, %c0_74] : memref<4x8x32xf32, #tpu.memory_space<vmem>>, vector<1x8x32xf32>
    %82 = vector.shape_cast %81 : vector<1x8x32xf32> to vector<8x32xf32>
    %cst_75 = arith.constant dense<0.000000e+00> : vector<8x32xf32>
    %83 = tpu.matmul %80, %82, %cst_75 {dimension_numbers = #tpu.dot_dimension_numbers<[1], [0], [0], [1], [0, 0, 1, 1], [], []>} : vector<8x8xf32>, vector<8x32xf32>, vector<8x32xf32> -> vector<8x32xf32>
    %84 = arith.addf %44, %83 : vector<8x32xf32>
    %c2 = arith.constant 2 : index
    %c0_76 = arith.constant 0 : index
    %c0_77 = arith.constant 0 : index
    %85 = vector.load %arg5[%c2, %c0_76, %c0_77] : memref<4x32x8xf32, #tpu.memory_space<vmem>>, vector<1x32x8xf32>
    %86 = vector.shape_cast %85 : vector<1x32x8xf32> to vector<32x8xf32>
    %cst_78 = arith.constant dense<0.000000e+00> : vector<8x8xf32>
    %87 = tpu.matmul %1, %86, %cst_78 {dimension_numbers = #tpu.dot_dimension_numbers<[1], [0], [0], [1], [0, 0, 1, 1], [], []>} : vector<8x32xf32>, vector<32x8xf32>, vector<8x8xf32> -> vector<8x8xf32>
    %c2_79 = arith.constant 2 : index
    %c0_80 = arith.constant 0 : index
    %c0_81 = arith.constant 0 : index
    %88 = vector.load %arg6[%c2_79, %c0_80, %c0_81] : memref<4x1x8xf32, #tpu.memory_space<vmem>>, vector<1x1x8xf32>
    %89 = vector.shape_cast %88 : vector<1x1x8xf32> to vector<1x8xf32>
    %90 = vector.broadcast %89 : vector<1x8xf32> to vector<8x8xf32>
    %91 = arith.addf %87, %90 : vector<8x8xf32>
    %cst_82 = arith.constant 0.353553385 : f32
    %92 = vector.broadcast %cst_82 : f32 to vector<8x8xf32>
    %93 = arith.mulf %91, %92 : vector<8x8xf32>
    %c2_83 = arith.constant 2 : index
    %c0_84 = arith.constant 0 : index
    %c0_85 = arith.constant 0 : index
    %94 = vector.load %arg7[%c2_83, %c0_84, %c0_85] : memref<4x32x8xf32, #tpu.memory_space<vmem>>, vector<1x32x8xf32>
    %95 = vector.shape_cast %94 : vector<1x32x8xf32> to vector<32x8xf32>
    %cst_86 = arith.constant dense<0.000000e+00> : vector<8x8xf32>
    %96 = tpu.matmul %3, %95, %cst_86 {dimension_numbers = #tpu.dot_dimension_numbers<[1], [0], [0], [1], [0, 0, 1, 1], [], []>} : vector<8x32xf32>, vector<32x8xf32>, vector<8x8xf32> -> vector<8x8xf32>
    %c2_87 = arith.constant 2 : index
    %c0_88 = arith.constant 0 : index
    %c0_89 = arith.constant 0 : index
    %97 = vector.load %arg8[%c2_87, %c0_88, %c0_89] : memref<4x1x8xf32, #tpu.memory_space<vmem>>, vector<1x1x8xf32>
    %98 = vector.shape_cast %97 : vector<1x1x8xf32> to vector<1x8xf32>
    %99 = vector.broadcast %98 : vector<1x8xf32> to vector<8x8xf32>
    %100 = arith.addf %96, %99 : vector<8x8xf32>
    %c2_90 = arith.constant 2 : index
    %c0_91 = arith.constant 0 : index
    %c0_92 = arith.constant 0 : index
    %101 = vector.load %arg9[%c2_90, %c0_91, %c0_92] : memref<4x32x8xf32, #tpu.memory_space<vmem>>, vector<1x32x8xf32>
    %102 = vector.shape_cast %101 : vector<1x32x8xf32> to vector<32x8xf32>
    %cst_93 = arith.constant dense<0.000000e+00> : vector<8x8xf32>
    %103 = tpu.matmul %5, %102, %cst_93 {dimension_numbers = #tpu.dot_dimension_numbers<[1], [0], [0], [1], [0, 0, 1, 1], [], []>} : vector<8x32xf32>, vector<32x8xf32>, vector<8x8xf32> -> vector<8x8xf32>
    %c2_94 = arith.constant 2 : index
    %c0_95 = arith.constant 0 : index
    %c0_96 = arith.constant 0 : index
    %104 = vector.load %arg10[%c2_94, %c0_95, %c0_96] : memref<4x1x8xf32, #tpu.memory_space<vmem>>, vector<1x1x8xf32>
    %105 = vector.shape_cast %104 : vector<1x1x8xf32> to vector<1x8xf32>
    %106 = vector.broadcast %105 : vector<1x8xf32> to vector<8x8xf32>
    %107 = arith.addf %103, %106 : vector<8x8xf32>
    %cst_97 = arith.constant dense<0.000000e+00> : vector<8x8xf32>
    %108 = tpu.matmul %93, %100, %cst_97 {dimension_numbers = #tpu.dot_dimension_numbers<[1], [1], [0], [0], [0, 0, 1, 0], [], []>} : vector<8x8xf32>, vector<8x8xf32>, vector<8x8xf32> -> vector<8x8xf32>
    %cst_98 = arith.constant 0.000000e+00 : f32
    %109 = vector.broadcast %cst_98 : f32 to vector<8x8xf32>
    %110 = arith.subf %109, %108 : vector<8x8xf32>
    %111 = math.exp %110 : vector<8x8xf32>
    %cst_99 = arith.constant 2.000000e+01 : f32
    %112 = vector.broadcast %cst_99 : f32 to vector<8x8xf32>
    %113 = arith.mulf %112, %111 : vector<8x8xf32>
    %cst_100 = arith.constant 1.000000e+00 : f32
    %114 = vector.broadcast %cst_100 : f32 to vector<8x8xf32>
    %115 = arith.addf %114, %113 : vector<8x8xf32>
    %116 = tpu.reciprocal %115 {approx = true} : vector<8x8xf32> -> vector<8x8xf32>
    %c0_101 = arith.constant 0 : index
    %c2_102 = arith.constant 2 : index
    %c0_103 = arith.constant 0 : index
    %c0_104 = arith.constant 0 : index
    %117 = vector.load %arg14[%c0_101, %c2_102, %c0_103, %c0_104] : memref<1x4x8x8xf32, #tpu.memory_space<vmem>>, vector<1x1x8x8xf32>
    %118 = vector.shape_cast %117 : vector<1x1x8x8xf32> to vector<8x8xf32>
    %119 = vector.shape_cast %116 : vector<8x8xf32> to vector<1x1x8x8xf32>
    tpu.vector_store %arg14[%c0_101, %c2_102, %c0_103, %c0_104], %119 {strides = array<i32>} : memref<1x4x8x8xf32, #tpu.memory_space<vmem>>, vector<1x1x8x8xf32>,
    %cst_105 = arith.constant dense<0.000000e+00> : vector<8x8xf32>
    %120 = tpu.matmul %116, %107, %cst_105 {dimension_numbers = #tpu.dot_dimension_numbers<[1], [0], [0], [1], [0, 0, 1, 1], [], []>} : vector<8x8xf32>, vector<8x8xf32>, vector<8x8xf32> -> vector<8x8xf32>
    %c2_106 = arith.constant 2 : index
    %c0_107 = arith.constant 0 : index
    %c0_108 = arith.constant 0 : index
    %121 = vector.load %arg11[%c2_106, %c0_107, %c0_108] : memref<4x8x32xf32, #tpu.memory_space<vmem>>, vector<1x8x32xf32>
    %122 = vector.shape_cast %121 : vector<1x8x32xf32> to vector<8x32xf32>
    %cst_109 = arith.constant dense<0.000000e+00> : vector<8x32xf32>
    %123 = tpu.matmul %120, %122, %cst_109 {dimension_numbers = #tpu.dot_dimension_numbers<[1], [0], [0], [1], [0, 0, 1, 1], [], []>} : vector<8x8xf32>, vector<8x32xf32>, vector<8x32xf32> -> vector<8x32xf32>
    %124 = arith.addf %84, %123 : vector<8x32xf32>
    %c3 = arith.constant 3 : index
    %c0_110 = arith.constant 0 : index
    %c0_111 = arith.constant 0 : index
    %125 = vector.load %arg5[%c3, %c0_110, %c0_111] : memref<4x32x8xf32, #tpu.memory_space<vmem>>, vector<1x32x8xf32>
    %126 = vector.shape_cast %125 : vector<1x32x8xf32> to vector<32x8xf32>
    %cst_112 = arith.constant dense<0.000000e+00> : vector<8x8xf32>
    %127 = tpu.matmul %1, %126, %cst_112 {dimension_numbers = #tpu.dot_dimension_numbers<[1], [0], [0], [1], [0, 0, 1, 1], [], []>} : vector<8x32xf32>, vector<32x8xf32>, vector<8x8xf32> -> vector<8x8xf32>
    %c3_113 = arith.constant 3 : index
    %c0_114 = arith.constant 0 : index
    %c0_115 = arith.constant 0 : index
    %128 = vector.load %arg6[%c3_113, %c0_114, %c0_115] : memref<4x1x8xf32, #tpu.memory_space<vmem>>, vector<1x1x8xf32>
    %129 = vector.shape_cast %128 : vector<1x1x8xf32> to vector<1x8xf32>
    %130 = vector.broadcast %129 : vector<1x8xf32> to vector<8x8xf32>
    %131 = arith.addf %127, %130 : vector<8x8xf32>
    %cst_116 = arith.constant 0.353553385 : f32
    %132 = vector.broadcast %cst_116 : f32 to vector<8x8xf32>
    %133 = arith.mulf %131, %132 : vector<8x8xf32>
    %c3_117 = arith.constant 3 : index
    %c0_118 = arith.constant 0 : index
    %c0_119 = arith.constant 0 : index
    %134 = vector.load %arg7[%c3_117, %c0_118, %c0_119] : memref<4x32x8xf32, #tpu.memory_space<vmem>>, vector<1x32x8xf32>
    %135 = vector.shape_cast %134 : vector<1x32x8xf32> to vector<32x8xf32>
    %cst_120 = arith.constant dense<0.000000e+00> : vector<8x8xf32>
    %136 = tpu.matmul %3, %135, %cst_120 {dimension_numbers = #tpu.dot_dimension_numbers<[1], [0], [0], [1], [0, 0, 1, 1], [], []>} : vector<8x32xf32>, vector<32x8xf32>, vector<8x8xf32> -> vector<8x8xf32>
    %c3_121 = arith.constant 3 : index
    %c0_122 = arith.constant 0 : index
    %c0_123 = arith.constant 0 : index
    %137 = vector.load %arg8[%c3_121, %c0_122, %c0_123] : memref<4x1x8xf32, #tpu.memory_space<vmem>>, vector<1x1x8xf32>
    %138 = vector.shape_cast %137 : vector<1x1x8xf32> to vector<1x8xf32>
    %139 = vector.broadcast %138 : vector<1x8xf32> to vector<8x8xf32>
    %140 = arith.addf %136, %139 : vector<8x8xf32>
    %c3_124 = arith.constant 3 : index
    %c0_125 = arith.constant 0 : index
    %c0_126 = arith.constant 0 : index
    %141 = vector.load %arg9[%c3_124, %c0_125, %c0_126] : memref<4x32x8xf32, #tpu.memory_space<vmem>>, vector<1x32x8xf32>
    %142 = vector.shape_cast %141 : vector<1x32x8xf32> to vector<32x8xf32>
    %cst_127 = arith.constant dense<0.000000e+00> : vector<8x8xf32>
    %143 = tpu.matmul %5, %142, %cst_127 {dimension_numbers = #tpu.dot_dimension_numbers<[1], [0], [0], [1], [0, 0, 1, 1], [], []>} : vector<8x32xf32>, vector<32x8xf32>, vector<8x8xf32> -> vector<8x8xf32>
    %c3_128 = arith.constant 3 : index
    %c0_129 = arith.constant 0 : index
    %c0_130 = arith.constant 0 : index
    %144 = vector.load %arg10[%c3_128, %c0_129, %c0_130] : memref<4x1x8xf32, #tpu.memory_space<vmem>>, vector<1x1x8xf32>
    %145 = vector.shape_cast %144 : vector<1x1x8xf32> to vector<1x8xf32>
    %146 = vector.broadcast %145 : vector<1x8xf32> to vector<8x8xf32>
    %147 = arith.addf %143, %146 : vector<8x8xf32>
    %cst_131 = arith.constant dense<0.000000e+00> : vector<8x8xf32>
    %148 = tpu.matmul %133, %140, %cst_131 {dimension_numbers = #tpu.dot_dimension_numbers<[1], [1], [0], [0], [0, 0, 1, 0], [], []>} : vector<8x8xf32>, vector<8x8xf32>, vector<8x8xf32> -> vector<8x8xf32>
    %cst_132 = arith.constant 0.000000e+00 : f32
    %149 = vector.broadcast %cst_132 : f32 to vector<8x8xf32>
    %150 = arith.subf %149, %148 : vector<8x8xf32>
    %151 = math.exp %150 : vector<8x8xf32>
    %cst_133 = arith.constant 2.000000e+01 : f32
    %152 = vector.broadcast %cst_133 : f32 to vector<8x8xf32>
    %153 = arith.mulf %152, %151 : vector<8x8xf32>
    %cst_134 = arith.constant 1.000000e+00 : f32
    %154 = vector.broadcast %cst_134 : f32 to vector<8x8xf32>
    %155 = arith.addf %154, %153 : vector<8x8xf32>
    %156 = tpu.reciprocal %155 {approx = true} : vector<8x8xf32> -> vector<8x8xf32>
    %c0_135 = arith.constant 0 : index
    %c3_136 = arith.constant 3 : index
    %c0_137 = arith.constant 0 : index
    %c0_138 = arith.constant 0 : index
    %157 = vector.load %arg14[%c0_135, %c3_136, %c0_137, %c0_138] : memref<1x4x8x8xf32, #tpu.memory_space<vmem>>, vector<1x1x8x8xf32>
    %158 = vector.shape_cast %157 : vector<1x1x8x8xf32> to vector<8x8xf32>
    %159 = vector.shape_cast %156 : vector<8x8xf32> to vector<1x1x8x8xf32>
    tpu.vector_store %arg14[%c0_135, %c3_136, %c0_137, %c0_138], %159 {strides = array<i32>} : memref<1x4x8x8xf32, #tpu.memory_space<vmem>>, vector<1x1x8x8xf32>,
    %cst_139 = arith.constant dense<0.000000e+00> : vector<8x8xf32>
    %160 = tpu.matmul %156, %147, %cst_139 {dimension_numbers = #tpu.dot_dimension_numbers<[1], [0], [0], [1], [0, 0, 1, 1], [], []>} : vector<8x8xf32>, vector<8x8xf32>, vector<8x8xf32> -> vector<8x8xf32>
    %c3_140 = arith.constant 3 : index
    %c0_141 = arith.constant 0 : index
    %c0_142 = arith.constant 0 : index
    %161 = vector.load %arg11[%c3_140, %c0_141, %c0_142] : memref<4x8x32xf32, #tpu.memory_space<vmem>>, vector<1x8x32xf32>
    %162 = vector.shape_cast %161 : vector<1x8x32xf32> to vector<8x32xf32>
    %cst_143 = arith.constant dense<0.000000e+00> : vector<8x32xf32>
    %163 = tpu.matmul %160, %162, %cst_143 {dimension_numbers = #tpu.dot_dimension_numbers<[1], [0], [0], [1], [0, 0, 1, 1], [], []>} : vector<8x8xf32>, vector<8x32xf32>, vector<8x32xf32> -> vector<8x32xf32>
    %164 = arith.addf %124, %163 : vector<8x32xf32>
    %c0_144 = arith.constant 0 : index
    %c0_145 = arith.constant 0 : index
    %165 = vector.load %arg12[%c0_144, %c0_145] : memref<1x32xf32, #tpu.memory_space<vmem>>, vector<1x32xf32>
    %166 = vector.broadcast %165 : vector<1x32xf32> to vector<8x32xf32>
    %167 = arith.addf %164, %166 : vector<8x32xf32>
    %c0_146 = arith.constant 0 : index
    %c0_147 = arith.constant 0 : index
    %c0_148 = arith.constant 0 : index
    %168 = vector.load %arg13[%c0_146, %c0_147, %c0_148] : memref<1x8x32xf32, #tpu.memory_space<vmem>>, vector<1x8x32xf32>
    %169 = vector.shape_cast %168 : vector<1x8x32xf32> to vector<8x32xf32>
    %170 = vector.shape_cast %167 : vector<8x32xf32> to vector<1x8x32xf32>
    tpu.vector_store %arg13[%c0_146, %c0_147, %c0_148], %170 {strides = array<i32>} : memref<1x8x32xf32, #tpu.memory_space<vmem>>, vector<1x8x32xf32>,
    return
  }
  func.func @transform_0(%arg0: i32, %arg1: i32) -> (i32, i32, i32) {
    %c0_i32 = arith.constant 0 : i32
    %c0_i32_0 = arith.constant 0 : i32
    return %arg0, %arg1, %c0_i32 : i32, i32, i32
  }
  func.func @transform_1(%arg0: i32, %arg1: i32) -> (i32, i32, i32) {
    %c0_i32 = arith.constant 0 : i32
    %c0_i32_0 = arith.constant 0 : i32
    %c0_i32_1 = arith.constant 0 : i32
    return %arg0, %c0_i32, %c0_i32_0 : i32, i32, i32
  }
  func.func @transform_2(%arg0: i32, %arg1: i32) -> (i32, i32, i32) {
    %c0_i32 = arith.constant 0 : i32
    %c0_i32_0 = arith.constant 0 : i32
    %c0_i32_1 = arith.constant 0 : i32
    return %arg0, %c0_i32, %c0_i32_0 : i32, i32, i32
  }
  func.func @transform_3(%arg0: i32, %arg1: i32) -> (i32, i32, i32) {
    %c0_i32 = arith.constant 0 : i32
    %c0_i32_0 = arith.constant 0 : i32
    %c0_i32_1 = arith.constant 0 : i32
    %c0_i32_2 = arith.constant 0 : i32
    return %c0_i32, %c0_i32_0, %c0_i32_1 : i32, i32, i32
  }
  func.func @transform_4(%arg0: i32, %arg1: i32) -> (i32, i32, i32) {
    %c0_i32 = arith.constant 0 : i32
    %c0_i32_0 = arith.constant 0 : i32
    %c0_i32_1 = arith.constant 0 : i32
    %c0_i32_2 = arith.constant 0 : i32
    return %c0_i32, %c0_i32_0, %c0_i32_1 : i32, i32, i32
  }
  func.func @transform_5(%arg0: i32, %arg1: i32) -> (i32, i32, i32) {
    %c0_i32 = arith.constant 0 : i32
    %c0_i32_0 = arith.constant 0 : i32
    %c0_i32_1 = arith.constant 0 : i32
    %c0_i32_2 = arith.constant 0 : i32
    return %c0_i32, %c0_i32_0, %c0_i32_1 : i32, i32, i32
  }
  func.func @transform_6(%arg0: i32, %arg1: i32) -> (i32, i32, i32) {
    %c0_i32 = arith.constant 0 : i32
    %c0_i32_0 = arith.constant 0 : i32
    %c0_i32_1 = arith.constant 0 : i32
    %c0_i32_2 = arith.constant 0 : i32
    return %c0_i32, %c0_i32_0, %c0_i32_1 : i32, i32, i32
  }
  func.func @transform_7(%arg0: i32, %arg1: i32) -> (i32, i32, i32) {
    %c0_i32 = arith.constant 0 : i32
    %c0_i32_0 = arith.constant 0 : i32
    %c0_i32_1 = arith.constant 0 : i32
    %c0_i32_2 = arith.constant 0 : i32
    return %c0_i32, %c0_i32_0, %c0_i32_1 : i32, i32, i32
  }
  func.func @transform_8(%arg0: i32, %arg1: i32) -> (i32, i32, i32) {
    %c0_i32 = arith.constant 0 : i32
    %c0_i32_0 = arith.constant 0 : i32
    %c0_i32_1 = arith.constant 0 : i32
    %c0_i32_2 = arith.constant 0 : i32
    return %c0_i32, %c0_i32_0, %c0_i32_1 : i32, i32, i32
  }
  func.func @transform_9(%arg0: i32, %arg1: i32) -> (i32, i32, i32) {
    %c0_i32 = arith.constant 0 : i32
    %c0_i32_0 = arith.constant 0 : i32
    %c0_i32_1 = arith.constant 0 : i32
    %c0_i32_2 = arith.constant 0 : i32
    return %c0_i32, %c0_i32_0, %c0_i32_1 : i32, i32, i32
  }
  func.func @transform_10(%arg0: i32, %arg1: i32) -> (i32, i32) {
    %c0_i32 = arith.constant 0 : i32
    %c0_i32_0 = arith.constant 0 : i32
    %c0_i32_1 = arith.constant 0 : i32
    return %c0_i32, %c0_i32_0 : i32, i32
  }
  func.func @transform_11(%arg0: i32, %arg1: i32) -> (i32, i32, i32) {
    %c0_i32 = arith.constant 0 : i32
    %c0_i32_0 = arith.constant 0 : i32
    return %arg0, %arg1, %c0_i32 : i32, i32, i32
  }
  func.func @transform_12(%arg0: i32, %arg1: i32) -> (i32, i32, i32, i32) {
    %c0_i32 = arith.constant 0 : i32
    %c0_i32_0 = arith.constant 0 : i32
    %c0_i32_1 = arith.constant 0 : i32
    return %arg0, %c0_i32, %arg1, %c0_i32_0 : i32, i32, i32, i32
  }
}

</mosaic_0001>

<llo_original>
// kernel: tpu_custom_call.1
$region0: #{tpu_custom_call.1}
  #allocation0 [shape = 'u32[]', space=smem, size = 0x4, offset = 0x4, fixed_abs, tag = 'smem constant byte address 0x4 - core index']
  #allocation1 [shape = 'u32[72,128]{1,0:T(1,128)}', space=vmem, size = 0x9000, scoped, tag = 'internal scratch']
  %s0 = inlined_call_operand.vmem [shape: f32[2,8,32], index: 0, kind: input, shape index: {}]
  %s1 = inlined_call_operand.vmem [shape: f32[2,8,32], index: 1, kind: input, shape index: {}]
  %s2 = inlined_call_operand.vmem [shape: f32[2,8,32], index: 2, kind: input, shape index: {}]
  %s3 = inlined_call_operand.vmem [shape: f32[4,32,8], index: 3, kind: input, shape index: {}]
  %s4 = inlined_call_operand.vmem [shape: f32[4,1,8], index: 4, kind: input, shape index: {}]
  %s5 = inlined_call_operand.vmem [shape: f32[4,32,8], index: 5, kind: input, shape index: {}]
  %s6 = inlined_call_operand.vmem [shape: f32[4,1,8], index: 6, kind: input, shape index: {}]
  %s7 = inlined_call_operand.vmem [shape: f32[4,32,8], index: 7, kind: input, shape index: {}]
  %s8 = inlined_call_operand.vmem [shape: f32[4,1,8], index: 8, kind: input, shape index: {}]
  %s9 = inlined_call_operand.vmem [shape: f32[4,8,32], index: 9, kind: input, shape index: {}]
  %s10 = inlined_call_operand.vmem [shape: f32[1,32], index: 10, kind: input, shape index: {}]
  %s11 = inlined_call_operand.hbm [shape: f32[2,8,32], index: 11, kind: output, shape index: {0}]
  %s12 = inlined_call_operand.hbm [shape: f32[2,4,8,8], index: 12, kind: output, shape index: {1}]
  %13 = xla_tuple %s11, %s12
  %s14 = sld [smem:[#allocation0]]
  $region85: #{tpu_custom_call.1} parent=0
    _
  %s16 = ssub.s32 1, %s14
  %s17 = scalar_select 0, %s16, %s14
  $region1: #{tpu_custom_call.1} parent=0
    #allocation2 [shape = 'u8[8192]{0}', space=vmem, size = 0x2000, scoped, tag = 'output window, operand 0']
    #allocation3 [shape = 's32[2]{0}', space=sflag, size = 0x8, scoped, tag = 'scoped memory for tpu_custom_call.1']
    #allocation4 [shape = 'u8[32768]{0}', space=vmem, size = 0x8000, scoped, tag = 'output window, operand 1']
    #allocation5 [shape = 's32[2]{0}', space=sflag, size = 0x8, scoped, tag = 'scoped memory for tpu_custom_call.1']
    %18 = vsyncpa [#allocation3], 0
    %s19 = scalar_lea.sflag [#allocation3], 1
    %20 = vsyncpa %s19, 0
    %21 = vsyncpa [#allocation5], 0
    %s22 = scalar_lea.sflag [#allocation5], 1
    %23 = vsyncpa %s22, 0
    loop: start=0, step=1, limit=4
    $region2: #{tpu_custom_call.1} parent=1 // loop_pre_header
      _
    $region3: #{tpu_custom_call.1} parent=1 // loop_header
      %s25 = sphi 0, %s29
      %p26 = scmp.ge.s32.totalorder %s25, 4
      %s32 = sphi 0, %s44
      %s33 = sphi 0, %s40
      %s34 = sphi 0, %s32
      %s35 = sphi 0, %s33
      %s36 = sphi 0, %s34
      %s37 = sphi 0, %s35
      %s49 = sphi 0, %s51
      %s52 = sphi 0, %s49
      %s53 = sphi 0, %s52
      %s69 = sphi 0, %s53
      %s75 = sphi 0, %s77
      %s78 = sphi 0, %s75
      %s79 = sphi 0, %s78
      %s95 = sphi 0, %s79
      %s101 = sphi 0, %s103
      %s104 = sphi 0, %s101
      %s105 = sphi 0, %s104
      %s121 = sphi 0, %s105
      %s125 = sphi 0, %s125
      %s127 = sphi 0, %s125
      %s128 = sphi 0, %s127
      %s142 = sphi 0, %s128
      %s146 = sphi 0, %s146
      %s148 = sphi 0, %s146
      %s149 = sphi 0, %s148
      %s163 = sphi 0, %s149
      %s167 = sphi 0, %s167
      %s169 = sphi 0, %s167
      %s170 = sphi 0, %s169
      %s184 = sphi 0, %s170
      %s188 = sphi 0, %s188
      %s190 = sphi 0, %s188
      %s191 = sphi 0, %s190
      %s205 = sphi 0, %s191
      %s209 = sphi 0, %s209
      %s211 = sphi 0, %s209
      %s212 = sphi 0, %s211
      %s226 = sphi 0, %s212
      %s230 = sphi 0, %s230
      %s232 = sphi 0, %s230
      %s233 = sphi 0, %s232
      %s247 = sphi 0, %s233
      %s251 = sphi 0, %s251
      %s253 = sphi 0, %s251
      %s254 = sphi 0, %s253
      %s268 = sphi 0, %s254
      %s272 = sphi 0, %s272
      %s274 = sphi 0, %s272
      %s275 = sphi 0, %s274
      %s289 = sphi 0, %s275
      %s297 = sphi 0, %s299
      %s300 = sphi 0, %s297
      %s301 = sphi 0, %s300
      %s317 = sphi 0, %s301
      %s325 = sphi 0, %s327
      %s328 = sphi 0, %s325
      %s329 = sphi 0, %s328
      %s345 = sphi 0, %s329
    $region4: #{tpu_custom_call.1} parent=1 // loop_header_branch
      %28 = sbr.rel (%p26) target = $region8
    $region5: #{tpu_custom_call.1} parent=1 // loop_body
      %s30 = ssub.s32 %s25, 1
      %s31 = ssub.s32 %s25, 2
      %s38 = sadd.s32 1, %s33
      %p39 = scmp.ge.s32.totalorder %s38, 1
      %s40 = scalar_select %p39, 0, %s38
      %s41 = sadd.s32 1, %s32
      %s42 = scalar_select %p39, %s41, %s32
      %p43 = scmp.ge.s32.totalorder %s42, 2
      %s44 = scalar_select %p43, 0, %s42
      %s45 = ssub.s32 %s32, %s44
      %s46 = ssub.s32 %s33, %s40
      %s47 = sor.u32 %s45, %s46
      %p48 = scmp.eq.s32.totalorder %s47, 0
      %s50 = sadd.s32 %s49, 1
      %s51 = scalar_select %p48, %s49, %s50
      %p54 = pneg %p48
      %p55 = scmp.eq.s32.totalorder %s25, 1
      %p56 = por %p54, %p55
      %p57 = scmp.ne.s32.totalorder %s49, %s52
      %p58 = scmp.eq.s32.totalorder %s25, 0
      %p59 = por %p57, %p58
      %p60 = scmp.ne.s32.totalorder %s49, %s52
      %p61 = scmp.eq.s32.totalorder %s30, 1
      %p62 = por %p60, %p61
      %p63 = scmp.ne.s32.totalorder %s52, %s53
      %p64 = scmp.eq.s32.totalorder %s30, 0
      %p65 = por %p63, %p64
      %p66 = scmp.ne.s32.totalorder %s52, %s53
      %p67 = scmp.eq.s32.totalorder %s31, 1
      %p68 = por %p66, %p67
      %p70 = scmp.ne.s32.totalorder %s53, %s69
      %p71 = scmp.eq.s32.totalorder %s31, 0
      %p72 = por %p70, %p71
      %s73 = ssub.s32 %s32, %s44
      %p74 = scmp.eq.s32.totalorder %s73, 0
      %s76 = sadd.s32 %s75, 1
      %s77 = scalar_select %p74, %s75, %s76
      %p80 = pneg %p74
      %p81 = scmp.eq.s32.totalorder %s25, 1
      %p82 = por %p80, %p81
      %p83 = scmp.ne.s32.totalorder %s75, %s78
      %p84 = scmp.eq.s32.totalorder %s25, 0
      %p85 = por %p83, %p84
      %p86 = scmp.ne.s32.totalorder %s75, %s78
      %p87 = scmp.eq.s32.totalorder %s30, 1
      %p88 = por %p86, %p87
      %p89 = scmp.ne.s32.totalorder %s78, %s79
      %p90 = scmp.eq.s32.totalorder %s30, 0
      %p91 = por %p89, %p90
      %p92 = scmp.ne.s32.totalorder %s78, %s79
      %p93 = scmp.eq.s32.totalorder %s31, 1
      %p94 = por %p92, %p93
      %p96 = scmp.ne.s32.totalorder %s79, %s95
      %p97 = scmp.eq.s32.totalorder %s31, 0
      %p98 = por %p96, %p97
      %s99 = ssub.s32 %s32, %s44
      %p100 = scmp.eq.s32.totalorder %s99, 0
      %s102 = sadd.s32 %s101, 1
      %s103 = scalar_select %p100, %s101, %s102
      %p106 = pneg %p100
      %p107 = scmp.eq.s32.totalorder %s25, 1
      %p108 = por %p106, %p107
      %p109 = scmp.ne.s32.totalorder %s101, %s104
      %p110 = scmp.eq.s32.totalorder %s25, 0
      %p111 = por %p109, %p110
      %p112 = scmp.ne.s32.totalorder %s101, %s104
      %p113 = scmp.eq.s32.totalorder %s30, 1
      %p114 = por %p112, %p113
      %p115 = scmp.ne.s32.totalorder %s104, %s105
      %p116 = scmp.eq.s32.totalorder %s30, 0
      %p117 = por %p115, %p116
      %p118 = scmp.ne.s32.totalorder %s104, %s105
      %p119 = scmp.eq.s32.totalorder %s31, 1
      %p120 = por %p118, %p119
      %p122 = scmp.ne.s32.totalorder %s105, %s121
      %p123 = scmp.eq.s32.totalorder %s31, 0
      %p124 = por %p122, %p123
      %s126 = sadd.s32 %s125, 1
      %p129 = scmp.eq.s32.totalorder %s25, 1
      %p130 = scmp.ne.s32.totalorder %s125, %s127
      %p131 = scmp.eq.s32.totalorder %s25, 0
      %p132 = por %p130, %p131
      %p133 = scmp.ne.s32.totalorder %s125, %s127
      %p134 = scmp.eq.s32.totalorder %s30, 1
      %p135 = por %p133, %p134
      %p136 = scmp.ne.s32.totalorder %s127, %s128
      %p137 = scmp.eq.s32.totalorder %s30, 0
      %p138 = por %p136, %p137
      %p139 = scmp.ne.s32.totalorder %s127, %s128
      %p140 = scmp.eq.s32.totalorder %s31, 1
      %p141 = por %p139, %p140
      %p143 = scmp.ne.s32.totalorder %s128, %s142
      %p144 = scmp.eq.s32.totalorder %s31, 0
      %p145 = por %p143, %p144
      %s147 = sadd.s32 %s146, 1
      %p150 = scmp.eq.s32.totalorder %s25, 1
      %p151 = scmp.ne.s32.totalorder %s146, %s148
      %p152 = scmp.eq.s32.totalorder %s25, 0
      %p153 = por %p151, %p152
      %p154 = scmp.ne.s32.totalorder %s146, %s148
      %p155 = scmp.eq.s32.totalorder %s30, 1
      %p156 = por %p154, %p155
      %p157 = scmp.ne.s32.totalorder %s148, %s149
      %p158 = scmp.eq.s32.totalorder %s30, 0
      %p159 = por %p157, %p158
      %p160 = scmp.ne.s32.totalorder %s148, %s149
      %p161 = scmp.eq.s32.totalorder %s31, 1
      %p162 = por %p160, %p161
      %p164 = scmp.ne.s32.totalorder %s149, %s163
      %p165 = scmp.eq.s32.totalorder %s31, 0
      %p166 = por %p164, %p165
      %s168 = sadd.s32 %s167, 1
      %p171 = scmp.eq.s32.totalorder %s25, 1
      %p172 = scmp.ne.s32.totalorder %s167, %s169
      %p173 = scmp.eq.s32.totalorder %s25, 0
      %p174 = por %p172, %p173
      %p175 = scmp.ne.s32.totalorder %s167, %s169
      %p176 = scmp.eq.s32.totalorder %s30, 1
      %p177 = por %p175, %p176
      %p178 = scmp.ne.s32.totalorder %s169, %s170
      %p179 = scmp.eq.s32.totalorder %s30, 0
      %p180 = por %p178, %p179
      %p181 = scmp.ne.s32.totalorder %s169, %s170
      %p182 = scmp.eq.s32.totalorder %s31, 1
      %p183 = por %p181, %p182
      %p185 = scmp.ne.s32.totalorder %s170, %s184
      %p186 = scmp.eq.s32.totalorder %s31, 0
      %p187 = por %p185, %p186
      %s189 = sadd.s32 %s188, 1
      %p192 = scmp.eq.s32.totalorder %s25, 1
      %p193 = scmp.ne.s32.totalorder %s188, %s190
      %p194 = scmp.eq.s32.totalorder %s25, 0
      %p195 = por %p193, %p194
      %p196 = scmp.ne.s32.totalorder %s188, %s190
      %p197 = scmp.eq.s32.totalorder %s30, 1
      %p198 = por %p196, %p197
      %p199 = scmp.ne.s32.totalorder %s190, %s191
      %p200 = scmp.eq.s32.totalorder %s30, 0
      %p201 = por %p199, %p200
      %p202 = scmp.ne.s32.totalorder %s190, %s191
      %p203 = scmp.eq.s32.totalorder %s31, 1
      %p204 = por %p202, %p203
      %p206 = scmp.ne.s32.totalorder %s191, %s205
      %p207 = scmp.eq.s32.totalorder %s31, 0
      %p208 = por %p206, %p207
      %s210 = sadd.s32 %s209, 1
      %p213 = scmp.eq.s32.totalorder %s25, 1
      %p214 = scmp.ne.s32.totalorder %s209, %s211
      %p215 = scmp.eq.s32.totalorder %s25, 0
      %p216 = por %p214, %p215
      %p217 = scmp.ne.s32.totalorder %s209, %s211
      %p218 = scmp.eq.s32.totalorder %s30, 1
      %p219 = por %p217, %p218
      %p220 = scmp.ne.s32.totalorder %s211, %s212
      %p221 = scmp.eq.s32.totalorder %s30, 0
      %p222 = por %p220, %p221
      %p223 = scmp.ne.s32.totalorder %s211, %s212
      %p224 = scmp.eq.s32.totalorder %s31, 1
      %p225 = por %p223, %p224
      %p227 = scmp.ne.s32.totalorder %s212, %s226
      %p228 = scmp.eq.s32.totalorder %s31, 0
      %p229 = por %p227, %p228
      %s231 = sadd.s32 %s230, 1
      %p234 = scmp.eq.s32.totalorder %s25, 1
      %p235 = scmp.ne.s32.totalorder %s230, %s232
      %p236 = scmp.eq.s32.totalorder %s25, 0
      %p237 = por %p235, %p236
      %p238 = scmp.ne.s32.totalorder %s230, %s232
      %p239 = scmp.eq.s32.totalorder %s30, 1
      %p240 = por %p238, %p239
      %p241 = scmp.ne.s32.totalorder %s232, %s233
      %p242 = scmp.eq.s32.totalorder %s30, 0
      %p243 = por %p241, %p242
      %p244 = scmp.ne.s32.totalorder %s232, %s233
      %p245 = scmp.eq.s32.totalorder %s31, 1
      %p246 = por %p244, %p245
      %p248 = scmp.ne.s32.totalorder %s233, %s247
      %p249 = scmp.eq.s32.totalorder %s31, 0
      %p250 = por %p248, %p249
      %s252 = sadd.s32 %s251, 1
      %p255 = scmp.eq.s32.totalorder %s25, 1
      %p256 = scmp.ne.s32.totalorder %s251, %s253
      %p257 = scmp.eq.s32.totalorder %s25, 0
      %p258 = por %p256, %p257
      %p259 = scmp.ne.s32.totalorder %s251, %s253
      %p260 = scmp.eq.s32.totalorder %s30, 1
      %p261 = por %p259, %p260
      %p262 = scmp.ne.s32.totalorder %s253, %s254
      %p263 = scmp.eq.s32.totalorder %s30, 0
      %p264 = por %p262, %p263
      %p265 = scmp.ne.s32.totalorder %s253, %s254
      %p266 = scmp.eq.s32.totalorder %s31, 1
      %p267 = por %p265, %p266
      %p269 = scmp.ne.s32.totalorder %s254, %s268
      %p270 = scmp.eq.s32.totalorder %s31, 0
      %p271 = por %p269, %p270
      %s273 = sadd.s32 %s272, 1
      %p276 = scmp.eq.s32.totalorder %s25, 1
      %p277 = scmp.ne.s32.totalorder %s272, %s274
      %p278 = scmp.eq.s32.totalorder %s25, 0
      %p279 = por %p277, %p278
      %p280 = scmp.ne.s32.totalorder %s272, %s274
      %p281 = scmp.eq.s32.totalorder %s30, 1
      %p282 = por %p280, %p281
      %p283 = scmp.ne.s32.totalorder %s274, %s275
      %p284 = scmp.eq.s32.totalorder %s30, 0
      %p285 = por %p283, %p284
      %p286 = scmp.ne.s32.totalorder %s274, %s275
      %p287 = scmp.eq.s32.totalorder %s31, 1
      %p288 = por %p286, %p287
      %p290 = scmp.ne.s32.totalorder %s275, %s289
      %p291 = scmp.eq.s32.totalorder %s31, 0
      %p292 = por %p290, %p291
      %s293 = ssub.s32 %s32, %s44
      %s294 = ssub.s32 %s33, %s40
      %s295 = sor.u32 %s293, %s294
      %p296 = scmp.eq.s32.totalorder %s295, 0
      %s298 = sadd.s32 %s297, 1
      %s299 = scalar_select %p296, %s297, %s298
      %p302 = pneg %p296
      %p303 = scmp.eq.s32.totalorder %s25, 1
      %p304 = por %p302, %p303
      %p305 = scmp.ne.s32.totalorder %s297, %s300
      %p306 = scmp.eq.s32.totalorder %s25, 0
      %p307 = por %p305, %p306
      %p308 = scmp.ne.s32.totalorder %s297, %s300
      %p309 = scmp.eq.s32.totalorder %s30, 1
      %p310 = por %p308, %p309
      %p311 = scmp.ne.s32.totalorder %s300, %s301
      %p312 = scmp.eq.s32.totalorder %s30, 0
      %p313 = por %p311, %p312
      %p314 = scmp.ne.s32.totalorder %s300, %s301
      %p315 = scmp.eq.s32.totalorder %s31, 1
      %p316 = por %p314, %p315
      %p318 = scmp.ne.s32.totalorder %s301, %s317
      %p319 = scmp.eq.s32.totalorder %s31, 0
      %p320 = por %p318, %p319
      %s321 = ssub.s32 %s32, %s44
      %s322 = ssub.s32 %s33, %s40
      %s323 = sor.u32 %s321, %s322
      %p324 = scmp.eq.s32.totalorder %s323, 0
      %s326 = sadd.s32 %s325, 1
      %s327 = scalar_select %p324, %s325, %s326
      %p330 = pneg %p324
      %p331 = scmp.eq.s32.totalorder %s25, 1
      %p332 = por %p330, %p331
      %p333 = scmp.ne.s32.totalorder %s325, %s328
      %p334 = scmp.eq.s32.totalorder %s25, 0
      %p335 = por %p333, %p334
      %p336 = scmp.ne.s32.totalorder %s325, %s328
      %p337 = scmp.eq.s32.totalorder %s30, 1
      %p338 = por %p336, %p337
      %p339 = scmp.ne.s32.totalorder %s328, %s329
      %p340 = scmp.eq.s32.totalorder %s30, 0
      %p341 = por %p339, %p340
      %p342 = scmp.ne.s32.totalorder %s328, %s329
      %p343 = scmp.eq.s32.totalorder %s31, 1
      %p344 = por %p342, %p343
      %p346 = scmp.ne.s32.totalorder %s329, %s345
      %p347 = scmp.eq.s32.totalorder %s31, 0
      %p348 = por %p346, %p347
      %p349 = scmp.le.s32.totalorder 1, %s25
      %p350 = scmp.lt.s32.totalorder %s25, 3
      %p351 = pnand %p349, %p350
      %p352 = pneg %p351
      // Predicated region
      $region9: #{tpu_custom_call.1} parent=5 // pred_check
        _
      $region10: #{tpu_custom_call.1} parent=5 // pred_check_branch
        %354 = sbr.rel (%p351) target = $region12
      $region11: #{tpu_custom_call.1} parent=5 // pred_region
        %s355 = ssub.s32 %s25, 1
        // Predicated region
        $region13: #{tpu_custom_call.1} parent=11 // pred_check
          %p356 = pneg %p138
        $region14: #{tpu_custom_call.1} parent=11 // pred_check_branch
          %358 = sbr.rel (%p356) target = $region16
        $region15: #{tpu_custom_call.1} parent=11 // pred_region
          _
        $region16: #{tpu_custom_call.1} parent=11 // pred_fallthru
          _
        // Predicated region
        $region17: #{tpu_custom_call.1} parent=11 // pred_check
          %p359 = pneg %p159
        $region18: #{tpu_custom_call.1} parent=11 // pred_check_branch
          %361 = sbr.rel (%p359) target = $region20
        $region19: #{tpu_custom_call.1} parent=11 // pred_region
          _
        $region20: #{tpu_custom_call.1} parent=11 // pred_fallthru
          _
        // Predicated region
        $region21: #{tpu_custom_call.1} parent=11 // pred_check
          %p362 = pneg %p180
        $region22: #{tpu_custom_call.1} parent=11 // pred_check_branch
          %364 = sbr.rel (%p362) target = $region24
        $region23: #{tpu_custom_call.1} parent=11 // pred_region
          _
        $region24: #{tpu_custom_call.1} parent=11 // pred_fallthru
          _
        // Predicated region
        $region25: #{tpu_custom_call.1} parent=11 // pred_check
          %p365 = pneg %p201
        $region26: #{tpu_custom_call.1} parent=11 // pred_check_branch
          %367 = sbr.rel (%p365) target = $region28
        $region27: #{tpu_custom_call.1} parent=11 // pred_region
          _
        $region28: #{tpu_custom_call.1} parent=11 // pred_fallthru
          _
        // Predicated region
        $region29: #{tpu_custom_call.1} parent=11 // pred_check
          %p368 = pneg %p222
        $region30: #{tpu_custom_call.1} parent=11 // pred_check_branch
          %370 = sbr.rel (%p368) target = $region32
        $region31: #{tpu_custom_call.1} parent=11 // pred_region
          _
        $region32: #{tpu_custom_call.1} parent=11 // pred_fallthru
          _
        // Predicated region
        $region33: #{tpu_custom_call.1} parent=11 // pred_check
          %p371 = pneg %p243
        $region34: #{tpu_custom_call.1} parent=11 // pred_check_branch
          %373 = sbr.rel (%p371) target = $region36
        $region35: #{tpu_custom_call.1} parent=11 // pred_region
          _
        $region36: #{tpu_custom_call.1} parent=11 // pred_fallthru
          _
        // Predicated region
        $region37: #{tpu_custom_call.1} parent=11 // pred_check
          %p374 = pneg %p264
        $region38: #{tpu_custom_call.1} parent=11 // pred_check_branch
          %376 = sbr.rel (%p374) target = $region40
        $region39: #{tpu_custom_call.1} parent=11 // pred_region
          _
        $region40: #{tpu_custom_call.1} parent=11 // pred_fallthru
          _
        // Predicated region
        $region41: #{tpu_custom_call.1} parent=11 // pred_check
          %p377 = pneg %p285
        $region42: #{tpu_custom_call.1} parent=11 // pred_check_branch
          %379 = sbr.rel (%p377) target = $region44
        $region43: #{tpu_custom_call.1} parent=11 // pred_region
          _
        $region44: #{tpu_custom_call.1} parent=11 // pred_fallthru
          _
      $region12: #{tpu_custom_call.1} parent=5 // pred_fallthru
        _
      %p380 = scmp.lt.s32.totalorder %s25, 2
      // Predicated region
      $region45: #{tpu_custom_call.1} parent=5 // pred_check
        %p381 = pneg %p380
      $region46: #{tpu_custom_call.1} parent=5 // pred_check_branch
        %383 = sbr.rel (%p381) target = $region48
      $region47: #{tpu_custom_call.1} parent=5 // pred_region
        // Predicated region
        $region49: #{tpu_custom_call.1} parent=47 // pred_check
          %p384 = pneg %p59
        $region50: #{tpu_custom_call.1} parent=47 // pred_check_branch
          %386 = sbr.rel (%p384) target = $region52
        $region51: #{tpu_custom_call.1} parent=47 // pred_region
          %p387 = scmp.lt.s32.totalorder %s32, 1
          %s388 = scalar_select %p387, %s32, 1
          %p389 = scmp.lt.s32.totalorder %s33, 0
          %s390 = scalar_select %p389, %s33, 0
          %s391 = sadd.s32 %s390, %s388
          %s392 = smul.addr %s391, 8
          %s393 = scalar_lea.vmem %s0, %s392
        $region52: #{tpu_custom_call.1} parent=47 // pred_fallthru
          _
        // Predicated region
        $region53: #{tpu_custom_call.1} parent=47 // pred_check
          %p394 = pneg %p85
        $region54: #{tpu_custom_call.1} parent=47 // pred_check_branch
          %396 = sbr.rel (%p394) target = $region56
        $region55: #{tpu_custom_call.1} parent=47 // pred_region
          %p397 = scmp.lt.s32.totalorder %s32, 1
          %s398 = scalar_select %p397, %s32, 1
          %s399 = smul.addr %s398, 8
          %s400 = scalar_lea.vmem %s1, %s399
        $region56: #{tpu_custom_call.1} parent=47 // pred_fallthru
          _
        // Predicated region
        $region57: #{tpu_custom_call.1} parent=47 // pred_check
          %p401 = pneg %p111
        $region58: #{tpu_custom_call.1} parent=47 // pred_check_branch
          %403 = sbr.rel (%p401) target = $region60
        $region59: #{tpu_custom_call.1} parent=47 // pred_region
          %p404 = scmp.lt.s32.totalorder %s32, 1
          %s405 = scalar_select %p404, %s32, 1
          %s406 = smul.addr %s405, 8
          %s407 = scalar_lea.vmem %s2, %s406
        $region60: #{tpu_custom_call.1} parent=47 // pred_fallthru
          _
      $region48: #{tpu_custom_call.1} parent=5 // pred_fallthru
        _
      %p408 = scmp.le.s32.totalorder 1, %s25
      %p409 = scmp.lt.s32.totalorder %s25, 3
      %p410 = pnand %p408, %p409
      %p411 = pneg %p410
      // Predicated region
      $region61: #{tpu_custom_call.1} parent=5 // pred_check
        _
      $region62: #{tpu_custom_call.1} parent=5 // pred_check_branch
        %413 = sbr.rel (%p410) target = $region64
      $region63: #{tpu_custom_call.1} parent=5 // pred_region
        %s414 = ssub.s32 %s25, 1
        %p415 = scmp.lt.s32.totalorder %s34, 1
        %s416 = scalar_select %p415, %s34, 1
        %p417 = scmp.lt.s32.totalorder %s35, 0
        %s418 = scalar_select %p417, %s35, 0
        %s419 = sadd.s32 %s418, %s416
        %s420 = smul.addr %s419, 8
        %s421 = scalar_lea.vmem %s0, %s420
        %p422 = pneg %p65
        %p423 = pneg %p62
        %p424 = scmp.lt.s32.totalorder %s34, 1
        %s425 = scalar_select %p424, %s34, 1
        %s426 = smul.addr %s425, 8
        %s427 = scalar_lea.vmem %s1, %s426
        %p428 = pneg %p91
        %p429 = pneg %p88
        %p430 = scmp.lt.s32.totalorder %s34, 1
        %s431 = scalar_select %p430, %s34, 1
        %s432 = smul.addr %s431, 8
        %s433 = scalar_lea.vmem %s2, %s432
        %p434 = pneg %p117
        %p435 = pneg %p114
        %p436 = pneg %p138
        %p437 = pneg %p135
        %p438 = pneg %p159
        %p439 = pneg %p156
        %p440 = pneg %p180
        %p441 = pneg %p177
        %p442 = pneg %p201
        %p443 = pneg %p198
        %p444 = pneg %p222
        %p445 = pneg %p219
        %p446 = pneg %p243
        %p447 = pneg %p240
        %p448 = pneg %p264
        %p449 = pneg %p261
        %p450 = pneg %p285
        %p451 = pneg %p282
        %p452 = pneg %p313
        %p453 = pneg %p310
        %s454 = sand.u32 %s300, 1
        %s455 = scalar_lea.sflag [#allocation3], %s454
        %s456 = sand.u32 %s300, 1
        %s457 = smul.addr %s456, 8
        %s458 = scalar_lea.vmem [#allocation2], %s457
        %p459 = pneg %p341
        %p460 = pneg %p338
        %s461 = sand.u32 %s328, 1
        %s462 = scalar_lea.sflag [#allocation5], %s461
        %s463 = sand.u32 %s328, 1
        %s464 = smul.addr %s463, 32
        %s465 = scalar_lea.vmem [#allocation4], %s464
        %p466 = scmp.lt.s32.totalorder %s34, 1
        %s467 = scalar_select %p466, %s34, 1
        %p468 = scmp.lt.s32.totalorder %s35, 0
        %s469 = scalar_select %p468, %s35, 0
        %s470 = sadd.s32 %s469, %s467
        %s471 = smul.addr %s470, 8
        %s472 = scalar_lea.vmem %s0, %s471
        %p473 = scmp.lt.s32.totalorder %s34, 1
        %s474 = scalar_select %p473, %s34, 1
        %s475 = smul.addr %s474, 8
        %s476 = scalar_lea.vmem %s1, %s475
        %p477 = scmp.lt.s32.totalorder %s34, 1
        %s478 = scalar_select %p477, %s34, 1
        %s479 = smul.addr %s478, 8
        %s480 = scalar_lea.vmem %s2, %s479
        %v481 = vld [vmem:[%s472] sm:$0xff]
        %v482 = vld [vmem:[%s476] sm:$0xff]
        %v483 = vld [vmem:[%s480] sm:$0xff]
        %v484 = vld [vmem:[%s3] sm:$0xff]
        %v485 = vld [vmem:[%s3 + $0x8] sm:$0xff]
        %v486 = vld [vmem:[%s3 + $0x10] sm:$0xff]
        %v487 = vld [vmem:[%s3 + $0x18] sm:$0xff]
        %v488 = vld [vmem:[%s4] sm:$0x1]
        %v490 = vperm.slane %v488, 0
        %vm492 = vcmask 261120
        %v494 = vsel %vm492, %v481, 0
        %496 = vmatpush.msra.mxu0 0.0
        %497 = vmatpush.msra.mxu0 0.0
        %498 = vmatpush.msra.mxu0 0.0
        %499 = vmatpush.msra.mxu0 0.0
        %500 = vmatpush.msra.mxu0 0.0
        %501 = vmatpush.msra.mxu0 0.0
        %502 = vmatpush.msra.mxu0 0.0
        %503 = vmatpush.msra.mxu0 0.0
        %504 = vmatpush.msra.mxu0 0.0
        %505 = vmatpush.msra.mxu0 0.0
        %506 = vmatpush.msra.mxu0 0.0
        %507 = vmatpush.msra.mxu0 0.0
        %508 = vmatpush.msra.mxu0 %v487
        %509 = vmatpush.msra.mxu0 %v486
        %510 = vmatpush.msra.mxu0 %v485
        %511 = vmatpush.msra.mxu0 %v484
        %512 = vmatmul.f32.gmra.mxu0 %v494
        %v513 = vpop.f32.mrf.mxu0
        %v514 = vadd.f32 %v490, %v513
        %515 = vdwg.mxu0
        %v516 = vmul.f32 %v514, 0.35355338
        %v517 = vld [vmem:[%s5] sm:$0xff]
        %v518 = vld [vmem:[%s5 + $0x8] sm:$0xff]
        %v519 = vld [vmem:[%s5 + $0x10] sm:$0xff]
        %v520 = vld [vmem:[%s5 + $0x18] sm:$0xff]
        %v521 = vld [vmem:[%s6] sm:$0x1]
        %v523 = vperm.slane %v521, 0
        %v526 = vsel %vm492, %v482, 0
        %528 = vmatpush.msra.mxu0 0.0
        %529 = vmatpush.msra.mxu0 0.0
        %530 = vmatpush.msra.mxu0 0.0
        %531 = vmatpush.msra.mxu0 0.0
        %532 = vmatpush.msra.mxu0 0.0
        %533 = vmatpush.msra.mxu0 0.0
        %534 = vmatpush.msra.mxu0 0.0
        %535 = vmatpush.msra.mxu0 0.0
        %536 = vmatpush.msra.mxu0 0.0
        %537 = vmatpush.msra.mxu0 0.0
        %538 = vmatpush.msra.mxu0 0.0
        %539 = vmatpush.msra.mxu0 0.0
        %540 = vmatpush.msra.mxu0 %v520
        %541 = vmatpush.msra.mxu0 %v519
        %542 = vmatpush.msra.mxu0 %v518
        %543 = vmatpush.msra.mxu0 %v517
        %544 = vmatmul.f32.gmra.mxu0 %v526
        %v545 = vpop.f32.mrf.mxu0
        %v546 = vadd.f32 %v523, %v545
        %547 = vdwg.mxu0
        %v548 = vld [vmem:[%s7] sm:$0xff]
        %v549 = vld [vmem:[%s7 + $0x8] sm:$0xff]
        %v550 = vld [vmem:[%s7 + $0x10] sm:$0xff]
        %v551 = vld [vmem:[%s7 + $0x18] sm:$0xff]
        %v552 = vld [vmem:[%s8] sm:$0x1]
        %v554 = vperm.slane %v552, 0
        %v557 = vsel %vm492, %v483, 0
        %559 = vmatpush.msra.mxu0 0.0
        %560 = vmatpush.msra.mxu0 0.0
        %561 = vmatpush.msra.mxu0 0.0
        %562 = vmatpush.msra.mxu0 0.0
        %563 = vmatpush.msra.mxu0 0.0
        %564 = vmatpush.msra.mxu0 0.0
        %565 = vmatpush.msra.mxu0 0.0
        %566 = vmatpush.msra.mxu0 0.0
        %567 = vmatpush.msra.mxu0 0.0
        %568 = vmatpush.msra.mxu0 0.0
        %569 = vmatpush.msra.mxu0 0.0
        %570 = vmatpush.msra.mxu0 0.0
        %571 = vmatpush.msra.mxu0 %v551
        %572 = vmatpush.msra.mxu0 %v550
        %573 = vmatpush.msra.mxu0 %v549
        %574 = vmatpush.msra.mxu0 %v548
        %575 = vmatmul.f32.gmra.mxu0 %v557
        %v576 = vpop.f32.mrf.mxu0
        %v577 = vadd.f32 %v554, %v576
        %578 = vdwg.mxu0
        %vm579 = vcmask 64512
        %v581 = vsel %vm579, %v516, 0
        %v584 = vsel %vm579, %v546, 0
        %586 = vmatpush.xpose.msra.mxu0 0.0
        %587 = vmatpush.xpose.msra.mxu0 0.0
        %588 = vmatpush.xpose.msra.mxu0 0.0
        %589 = vmatpush.xpose.msra.mxu0 0.0
        %590 = vmatpush.xpose.msra.mxu0 0.0
        %591 = vmatpush.xpose.msra.mxu0 0.0
        %592 = vmatpush.xpose.msra.mxu0 0.0
        %593 = vmatpush.xpose.msra.mxu0 0.0
        %594 = vmatpush.xpose.msra.mxu0 0.0
        %595 = vmatpush.xpose.msra.mxu0 0.0
        %596 = vmatpush.xpose.msra.mxu0 0.0
        %597 = vmatpush.xpose.msra.mxu0 0.0
        %598 = vmatpush.xpose.msra.mxu0 0.0
        %599 = vmatpush.xpose.msra.mxu0 0.0
        %600 = vmatpush.xpose.msra.mxu0 0.0
        %601 = vmatpush.xpose.msra.mxu0 %v584
        %602 = vmatmul.f32.gmra.mxu0 %v581
        %v603 = vpop.f32.mrf.mxu0
        %v604 = vadd.f32 0.0, %v603
        %605 = vdwg.mxu0
        %v606 = vsub.f32 0.0, %v604
        %v607 = vmul.f32 %v606, 1.442695
        %v608 = vpow.pop %v607
        %v609 = vmul.f32 %v608, 20.0
        %v610 = vadd.f32 %v609, 1.0
        %v611 = vrcp.pop %v610
        %612 = vst.msk [vmem:[%s465] sm:$0xff] %vm579, %v611
        %v614 = vsel %vm579, %v611, 0
        %616 = vmatpush.msra.mxu0 0.0
        %617 = vmatpush.msra.mxu0 0.0
        %618 = vmatpush.msra.mxu0 0.0
        %619 = vmatpush.msra.mxu0 0.0
        %620 = vmatpush.msra.mxu0 0.0
        %621 = vmatpush.msra.mxu0 0.0
        %622 = vmatpush.msra.mxu0 0.0
        %623 = vmatpush.msra.mxu0 0.0
        %624 = vmatpush.msra.mxu0 0.0
        %625 = vmatpush.msra.mxu0 0.0
        %626 = vmatpush.msra.mxu0 0.0
        %627 = vmatpush.msra.mxu0 0.0
        %628 = vmatpush.msra.mxu0 0.0
        %629 = vmatpush.msra.mxu0 0.0
        %630 = vmatpush.msra.mxu0 0.0
        %631 = vmatpush.msra.mxu0 %v577
        %632 = vmatmul.f32.gmra.mxu0 %v614
        %v633 = vpop.f32.mrf.mxu0
        %v634 = vadd.f32 0.0, %v633
        %635 = vdwg.mxu0
        %v636 = vld [vmem:[%s9] sm:$0xff]
        %s637 = scalar_lea.vmem %s3, 32
        %v638 = vld [vmem:[%s637] sm:$0xff]
        %v639 = vld [vmem:[%s637 + $0x8] sm:$0xff]
        %v640 = vld [vmem:[%s637 + $0x10] sm:$0xff]
        %v641 = vld [vmem:[%s637 + $0x18] sm:$0xff]
        %s642 = scalar_lea.vmem %s4, 1
        %v643 = vld [vmem:[%s642] sm:$0x1]
        %v645 = vperm.slane %v643, 0
        %647 = vmatpush.msra.mxu0 0.0
        %648 = vmatpush.msra.mxu0 0.0
        %649 = vmatpush.msra.mxu0 0.0
        %650 = vmatpush.msra.mxu0 0.0
        %651 = vmatpush.msra.mxu0 0.0
        %652 = vmatpush.msra.mxu0 0.0
        %653 = vmatpush.msra.mxu0 0.0
        %654 = vmatpush.msra.mxu0 0.0
        %655 = vmatpush.msra.mxu0 0.0
        %656 = vmatpush.msra.mxu0 0.0
        %657 = vmatpush.msra.mxu0 0.0
        %658 = vmatpush.msra.mxu0 0.0
        %659 = vmatpush.msra.mxu0 %v641
        %660 = vmatpush.msra.mxu0 %v640
        %661 = vmatpush.msra.mxu0 %v639
        %662 = vmatpush.msra.mxu0 %v638
        %663 = vmatmul.f32.gmra.mxu0 %v494
        %v664 = vpop.f32.mrf.mxu0
        %v665 = vadd.f32 %v645, %v664
        %666 = vdwg.mxu0
        %v667 = vmul.f32 %v665, 0.35355338
        %s668 = scalar_lea.vmem %s5, 32
        %v669 = vld [vmem:[%s668] sm:$0xff]
        %v670 = vld [vmem:[%s668 + $0x8] sm:$0xff]
        %v671 = vld [vmem:[%s668 + $0x10] sm:$0xff]
        %v672 = vld [vmem:[%s668 + $0x18] sm:$0xff]
        %s673 = scalar_lea.vmem %s6, 1
        %v674 = vld [vmem:[%s673] sm:$0x1]
        %v676 = vperm.slane %v674, 0
        %678 = vmatpush.msra.mxu0 0.0
        %679 = vmatpush.msra.mxu0 0.0
        %680 = vmatpush.msra.mxu0 0.0
        %681 = vmatpush.msra.mxu0 0.0
        %682 = vmatpush.msra.mxu0 0.0
        %683 = vmatpush.msra.mxu0 0.0
        %684 = vmatpush.msra.mxu0 0.0
        %685 = vmatpush.msra.mxu0 0.0
        %686 = vmatpush.msra.mxu0 0.0
        %687 = vmatpush.msra.mxu0 0.0
        %688 = vmatpush.msra.mxu0 0.0
        %689 = vmatpush.msra.mxu0 0.0
        %690 = vmatpush.msra.mxu0 %v672
        %691 = vmatpush.msra.mxu0 %v671
        %692 = vmatpush.msra.mxu0 %v670
        %693 = vmatpush.msra.mxu0 %v669
        %694 = vmatmul.f32.gmra.mxu0 %v526
        %v695 = vpop.f32.mrf.mxu0
        %v696 = vadd.f32 %v676, %v695
        %697 = vdwg.mxu0
        %s698 = scalar_lea.vmem %s7, 32
        %v699 = vld [vmem:[%s698] sm:$0xff]
        %v700 = vld [vmem:[%s698 + $0x8] sm:$0xff]
        %v701 = vld [vmem:[%s698 + $0x10] sm:$0xff]
        %v702 = vld [vmem:[%s698 + $0x18] sm:$0xff]
        %s703 = scalar_lea.vmem %s8, 1
        %v704 = vld [vmem:[%s703] sm:$0x1]
        %v706 = vperm.slane %v704, 0
        %708 = vmatpush.msra.mxu0 0.0
        %709 = vmatpush.msra.mxu0 0.0
        %710 = vmatpush.msra.mxu0 0.0
        %711 = vmatpush.msra.mxu0 0.0
        %712 = vmatpush.msra.mxu0 0.0
        %713 = vmatpush.msra.mxu0 0.0
        %714 = vmatpush.msra.mxu0 0.0
        %715 = vmatpush.msra.mxu0 0.0
        %716 = vmatpush.msra.mxu0 0.0
        %717 = vmatpush.msra.mxu0 0.0
        %718 = vmatpush.msra.mxu0 0.0
        %719 = vmatpush.msra.mxu0 0.0
        %720 = vmatpush.msra.mxu0 %v702
        %721 = vmatpush.msra.mxu0 %v701
        %722 = vmatpush.msra.mxu0 %v700
        %723 = vmatpush.msra.mxu0 %v699
        %724 = vmatmul.f32.gmra.mxu0 %v557
        %v725 = vpop.f32.mrf.mxu0
        %v726 = vadd.f32 %v706, %v725
        %727 = vdwg.mxu0
        %v729 = vsel %vm579, %v667, 0
        %v732 = vsel %vm579, %v696, 0
        %734 = vmatpush.xpose.msra.mxu0 0.0
        %735 = vmatpush.xpose.msra.mxu0 0.0
        %736 = vmatpush.xpose.msra.mxu0 0.0
        %737 = vmatpush.xpose.msra.mxu0 0.0
        %738 = vmatpush.xpose.msra.mxu0 0.0
        %739 = vmatpush.xpose.msra.mxu0 0.0
        %740 = vmatpush.xpose.msra.mxu0 0.0
        %741 = vmatpush.xpose.msra.mxu0 0.0
        %742 = vmatpush.xpose.msra.mxu0 0.0
        %743 = vmatpush.xpose.msra.mxu0 0.0
        %744 = vmatpush.xpose.msra.mxu0 0.0
        %745 = vmatpush.xpose.msra.mxu0 0.0
        %746 = vmatpush.xpose.msra.mxu0 0.0
        %747 = vmatpush.xpose.msra.mxu0 0.0
        %748 = vmatpush.xpose.msra.mxu0 0.0
        %749 = vmatpush.xpose.msra.mxu0 %v732
        %750 = vmatmul.f32.gmra.mxu0 %v729
        %v751 = vpop.f32.mrf.mxu0
        %v752 = vadd.f32 0.0, %v751
        %753 = vdwg.mxu0
        %v754 = vsub.f32 0.0, %v752
        %v755 = vmul.f32 %v754, 1.442695
        %v756 = vpow.pop %v755
        %v757 = vmul.f32 %v756, 20.0
        %v758 = vadd.f32 %v757, 1.0
        %v759 = vrcp.pop %v758
        %s760 = scalar_lea.vmem %s465, 8 [#allocation4]
        %761 = vst.msk [vmem:[%s760] sm:$0xff] %vm579, %v759
        %v763 = vsel %vm579, %v759, 0
        %765 = vmatpush.msra.mxu0 0.0
        %766 = vmatpush.msra.mxu0 0.0
        %767 = vmatpush.msra.mxu0 0.0
        %768 = vmatpush.msra.mxu0 0.0
        %769 = vmatpush.msra.mxu0 0.0
        %770 = vmatpush.msra.mxu0 0.0
        %771 = vmatpush.msra.mxu0 0.0
        %772 = vmatpush.msra.mxu0 0.0
        %773 = vmatpush.msra.mxu0 0.0
        %774 = vmatpush.msra.mxu0 0.0
        %775 = vmatpush.msra.mxu0 0.0
        %776 = vmatpush.msra.mxu0 0.0
        %777 = vmatpush.msra.mxu0 0.0
        %778 = vmatpush.msra.mxu0 0.0
        %779 = vmatpush.msra.mxu0 0.0
        %780 = vmatpush.msra.mxu0 %v726
        %781 = vmatmul.f32.gmra.mxu0 %v763
        %v782 = vpop.f32.mrf.mxu0
        %v783 = vadd.f32 0.0, %v782
        %784 = vdwg.mxu0
        %s785 = scalar_lea.vmem %s9, 8
        %v786 = vld [vmem:[%s785] sm:$0xff]
        %v788 = vsel %vm579, %v783, 0
        %790 = vmatpush.msra.mxu0 0.0
        %791 = vmatpush.msra.mxu0 0.0
        %792 = vmatpush.msra.mxu0 0.0
        %793 = vmatpush.msra.mxu0 0.0
        %794 = vmatpush.msra.mxu0 0.0
        %795 = vmatpush.msra.mxu0 0.0
        %796 = vmatpush.msra.mxu0 0.0
        %797 = vmatpush.msra.mxu0 0.0
        %798 = vmatpush.msra.mxu0 0.0
        %799 = vmatpush.msra.mxu0 0.0
        %800 = vmatpush.msra.mxu0 0.0
        %801 = vmatpush.msra.mxu0 0.0
        %802 = vmatpush.msra.mxu0 0.0
        %803 = vmatpush.msra.mxu0 0.0
        %804 = vmatpush.msra.mxu0 0.0
        %805 = vmatpush.msra.mxu0 %v786
        %806 = vmatmul.f32.gmra.mxu0 %v788
        %v807 = vpop.f32.mrf.mxu0
        %v808 = vadd.f32 0.0, %v807
        %809 = vdwg.mxu0
        %v811 = vsel %vm579, %v634, 0
        %813 = vmatpush.msra.mxu0 0.0
        %814 = vmatpush.msra.mxu0 0.0
        %815 = vmatpush.msra.mxu0 0.0
        %816 = vmatpush.msra.mxu0 0.0
        %817 = vmatpush.msra.mxu0 0.0
        %818 = vmatpush.msra.mxu0 0.0
        %819 = vmatpush.msra.mxu0 0.0
        %820 = vmatpush.msra.mxu0 0.0
        %821 = vmatpush.msra.mxu0 0.0
        %822 = vmatpush.msra.mxu0 0.0
        %823 = vmatpush.msra.mxu0 0.0
        %824 = vmatpush.msra.mxu0 0.0
        %825 = vmatpush.msra.mxu0 0.0
        %826 = vmatpush.msra.mxu0 0.0
        %827 = vmatpush.msra.mxu0 0.0
        %828 = vmatpush.msra.mxu0 %v636
        %829 = vmatmul.f32.gmra.mxu0 %v811
        %v830 = vpop.f32.mrf.mxu0
        %v831 = vadd.f32 %v808, %v830
        %832 = vdwg.mxu0
        %s833 = scalar_lea.vmem %s3, 64
        %v834 = vld [vmem:[%s833] sm:$0xff]
        %v835 = vld [vmem:[%s833 + $0x8] sm:$0xff]
        %v836 = vld [vmem:[%s833 + $0x10] sm:$0xff]
        %v837 = vld [vmem:[%s833 + $0x18] sm:$0xff]
        %s838 = scalar_lea.vmem %s4, 2
        %v839 = vld [vmem:[%s838] sm:$0x1]
        %v841 = vperm.slane %v839, 0
        %843 = vmatpush.msra.mxu0 0.0
        %844 = vmatpush.msra.mxu0 0.0
        %845 = vmatpush.msra.mxu0 0.0
        %846 = vmatpush.msra.mxu0 0.0
        %847 = vmatpush.msra.mxu0 0.0
        %848 = vmatpush.msra.mxu0 0.0
        %849 = vmatpush.msra.mxu0 0.0
        %850 = vmatpush.msra.mxu0 0.0
        %851 = vmatpush.msra.mxu0 0.0
        %852 = vmatpush.msra.mxu0 0.0
        %853 = vmatpush.msra.mxu0 0.0
        %854 = vmatpush.msra.mxu0 0.0
        %855 = vmatpush.msra.mxu0 %v837
        %856 = vmatpush.msra.mxu0 %v836
        %857 = vmatpush.msra.mxu0 %v835
        %858 = vmatpush.msra.mxu0 %v834
        %859 = vmatmul.f32.gmra.mxu0 %v494
        %v860 = vpop.f32.mrf.mxu0
        %v861 = vadd.f32 %v841, %v860
        %862 = vdwg.mxu0
        %v863 = vmul.f32 %v861, 0.35355338
        %s864 = scalar_lea.vmem %s5, 64
        %v865 = vld [vmem:[%s864] sm:$0xff]
        %v866 = vld [vmem:[%s864 + $0x8] sm:$0xff]
        %v867 = vld [vmem:[%s864 + $0x10] sm:$0xff]
        %v868 = vld [vmem:[%s864 + $0x18] sm:$0xff]
        %s869 = scalar_lea.vmem %s6, 2
        %v870 = vld [vmem:[%s869] sm:$0x1]
        %v872 = vperm.slane %v870, 0
        %874 = vmatpush.msra.mxu0 0.0
        %875 = vmatpush.msra.mxu0 0.0
        %876 = vmatpush.msra.mxu0 0.0
        %877 = vmatpush.msra.mxu0 0.0
        %878 = vmatpush.msra.mxu0 0.0
        %879 = vmatpush.msra.mxu0 0.0
        %880 = vmatpush.msra.mxu0 0.0
        %881 = vmatpush.msra.mxu0 0.0
        %882 = vmatpush.msra.mxu0 0.0
        %883 = vmatpush.msra.mxu0 0.0
        %884 = vmatpush.msra.mxu0 0.0
        %885 = vmatpush.msra.mxu0 0.0
        %886 = vmatpush.msra.mxu0 %v868
        %887 = vmatpush.msra.mxu0 %v867
        %888 = vmatpush.msra.mxu0 %v866
        %889 = vmatpush.msra.mxu0 %v865
        %890 = vmatmul.f32.gmra.mxu0 %v526
        %v891 = vpop.f32.mrf.mxu0
        %v892 = vadd.f32 %v872, %v891
        %893 = vdwg.mxu0
        %s894 = scalar_lea.vmem %s7, 64
        %v895 = vld [vmem:[%s894] sm:$0xff]
        %v896 = vld [vmem:[%s894 + $0x8] sm:$0xff]
        %v897 = vld [vmem:[%s894 + $0x10] sm:$0xff]
        %v898 = vld [vmem:[%s894 + $0x18] sm:$0xff]
        %s899 = scalar_lea.vmem %s8, 2
        %v900 = vld [vmem:[%s899] sm:$0x1]
        %v902 = vperm.slane %v900, 0
        %904 = vmatpush.msra.mxu0 0.0
        %905 = vmatpush.msra.mxu0 0.0
        %906 = vmatpush.msra.mxu0 0.0
        %907 = vmatpush.msra.mxu0 0.0
        %908 = vmatpush.msra.mxu0 0.0
        %909 = vmatpush.msra.mxu0 0.0
        %910 = vmatpush.msra.mxu0 0.0
        %911 = vmatpush.msra.mxu0 0.0
        %912 = vmatpush.msra.mxu0 0.0
        %913 = vmatpush.msra.mxu0 0.0
        %914 = vmatpush.msra.mxu0 0.0
        %915 = vmatpush.msra.mxu0 0.0
        %916 = vmatpush.msra.mxu0 %v898
        %917 = vmatpush.msra.mxu0 %v897
        %918 = vmatpush.msra.mxu0 %v896
        %919 = vmatpush.msra.mxu0 %v895
        %920 = vmatmul.f32.gmra.mxu0 %v557
        %v921 = vpop.f32.mrf.mxu0
        %v922 = vadd.f32 %v902, %v921
        %923 = vdwg.mxu0
        %v925 = vsel %vm579, %v863, 0
        %v928 = vsel %vm579, %v892, 0
        %930 = vmatpush.xpose.msra.mxu0 0.0
        %931 = vmatpush.xpose.msra.mxu0 0.0
        %932 = vmatpush.xpose.msra.mxu0 0.0
        %933 = vmatpush.xpose.msra.mxu0 0.0
        %934 = vmatpush.xpose.msra.mxu0 0.0
        %935 = vmatpush.xpose.msra.mxu0 0.0
        %936 = vmatpush.xpose.msra.mxu0 0.0
        %937 = vmatpush.xpose.msra.mxu0 0.0
        %938 = vmatpush.xpose.msra.mxu0 0.0
        %939 = vmatpush.xpose.msra.mxu0 0.0
        %940 = vmatpush.xpose.msra.mxu0 0.0
        %941 = vmatpush.xpose.msra.mxu0 0.0
        %942 = vmatpush.xpose.msra.mxu0 0.0
        %943 = vmatpush.xpose.msra.mxu0 0.0
        %944 = vmatpush.xpose.msra.mxu0 0.0
        %945 = vmatpush.xpose.msra.mxu0 %v928
        %946 = vmatmul.f32.gmra.mxu0 %v925
        %v947 = vpop.f32.mrf.mxu0
        %v948 = vadd.f32 0.0, %v947
        %949 = vdwg.mxu0
        %v950 = vsub.f32 0.0, %v948
        %v951 = vmul.f32 %v950, 1.442695
        %v952 = vpow.pop %v951
        %v953 = vmul.f32 %v952, 20.0
        %v954 = vadd.f32 %v953, 1.0
        %v955 = vrcp.pop %v954
        %s956 = scalar_lea.vmem %s465, 16 [#allocation4]
        %957 = vst.msk [vmem:[%s956] sm:$0xff] %vm579, %v955
        %v959 = vsel %vm579, %v955, 0
        %961 = vmatpush.msra.mxu0 0.0
        %962 = vmatpush.msra.mxu0 0.0
        %963 = vmatpush.msra.mxu0 0.0
        %964 = vmatpush.msra.mxu0 0.0
        %965 = vmatpush.msra.mxu0 0.0
        %966 = vmatpush.msra.mxu0 0.0
        %967 = vmatpush.msra.mxu0 0.0
        %968 = vmatpush.msra.mxu0 0.0
        %969 = vmatpush.msra.mxu0 0.0
        %970 = vmatpush.msra.mxu0 0.0
        %971 = vmatpush.msra.mxu0 0.0
        %972 = vmatpush.msra.mxu0 0.0
        %973 = vmatpush.msra.mxu0 0.0
        %974 = vmatpush.msra.mxu0 0.0
        %975 = vmatpush.msra.mxu0 0.0
        %976 = vmatpush.msra.mxu0 %v922
        %977 = vmatmul.f32.gmra.mxu0 %v959
        %v978 = vpop.f32.mrf.mxu0
        %v979 = vadd.f32 0.0, %v978
        %980 = vdwg.mxu0
        %s981 = scalar_lea.vmem %s9, 16
        %v982 = vld [vmem:[%s981] sm:$0xff]
        %v984 = vsel %vm579, %v979, 0
        %986 = vmatpush.msra.mxu0 0.0
        %987 = vmatpush.msra.mxu0 0.0
        %988 = vmatpush.msra.mxu0 0.0
        %989 = vmatpush.msra.mxu0 0.0
        %990 = vmatpush.msra.mxu0 0.0
        %991 = vmatpush.msra.mxu0 0.0
        %992 = vmatpush.msra.mxu0 0.0
        %993 = vmatpush.msra.mxu0 0.0
        %994 = vmatpush.msra.mxu0 0.0
        %995 = vmatpush.msra.mxu0 0.0
        %996 = vmatpush.msra.mxu0 0.0
        %997 = vmatpush.msra.mxu0 0.0
        %998 = vmatpush.msra.mxu0 0.0
        %999 = vmatpush.msra.mxu0 0.0
        %1000 = vmatpush.msra.mxu0 0.0
        %1001 = vmatpush.msra.mxu0 %v982
        %1002 = vmatmul.f32.gmra.mxu0 %v984
        %v1003 = vpop.f32.mrf.mxu0
        %v1004 = vadd.f32 0.0, %v1003
        %1005 = vdwg.mxu0
        %v1006 = vadd.f32 %v831, %v1004
        %s1007 = scalar_lea.vmem %s3, 96
        %v1008 = vld [vmem:[%s1007] sm:$0xff]
        %v1009 = vld [vmem:[%s1007 + $0x8] sm:$0xff]
        %v1010 = vld [vmem:[%s1007 + $0x10] sm:$0xff]
        %v1011 = vld [vmem:[%s1007 + $0x18] sm:$0xff]
        %s1012 = scalar_lea.vmem %s4, 3
        %v1013 = vld [vmem:[%s1012] sm:$0x1]
        %v1015 = vperm.slane %v1013, 0
        %1017 = vmatpush.msra.mxu0 0.0
        %1018 = vmatpush.msra.mxu0 0.0
        %1019 = vmatpush.msra.mxu0 0.0
        %1020 = vmatpush.msra.mxu0 0.0
        %1021 = vmatpush.msra.mxu0 0.0
        %1022 = vmatpush.msra.mxu0 0.0
        %1023 = vmatpush.msra.mxu0 0.0
        %1024 = vmatpush.msra.mxu0 0.0
        %1025 = vmatpush.msra.mxu0 0.0
        %1026 = vmatpush.msra.mxu0 0.0
        %1027 = vmatpush.msra.mxu0 0.0
        %1028 = vmatpush.msra.mxu0 0.0
        %1029 = vmatpush.msra.mxu0 %v1011
        %1030 = vmatpush.msra.mxu0 %v1010
        %1031 = vmatpush.msra.mxu0 %v1009
        %1032 = vmatpush.msra.mxu0 %v1008
        %1033 = vmatmul.f32.gmra.mxu0 %v494
        %v1034 = vpop.f32.mrf.mxu0
        %v1035 = vadd.f32 %v1015, %v1034
        %1036 = vdwg.mxu0
        %v1037 = vmul.f32 %v1035, 0.35355338
        %s1038 = scalar_lea.vmem %s5, 96
        %v1039 = vld [vmem:[%s1038] sm:$0xff]
        %v1040 = vld [vmem:[%s1038 + $0x8] sm:$0xff]
        %v1041 = vld [vmem:[%s1038 + $0x10] sm:$0xff]
        %v1042 = vld [vmem:[%s1038 + $0x18] sm:$0xff]
        %s1043 = scalar_lea.vmem %s6, 3
        %v1044 = vld [vmem:[%s1043] sm:$0x1]
        %v1046 = vperm.slane %v1044, 0
        %1048 = vmatpush.msra.mxu0 0.0
        %1049 = vmatpush.msra.mxu0 0.0
        %1050 = vmatpush.msra.mxu0 0.0
        %1051 = vmatpush.msra.mxu0 0.0
        %1052 = vmatpush.msra.mxu0 0.0
        %1053 = vmatpush.msra.mxu0 0.0
        %1054 = vmatpush.msra.mxu0 0.0
        %1055 = vmatpush.msra.mxu0 0.0
        %1056 = vmatpush.msra.mxu0 0.0
        %1057 = vmatpush.msra.mxu0 0.0
        %1058 = vmatpush.msra.mxu0 0.0
        %1059 = vmatpush.msra.mxu0 0.0
        %1060 = vmatpush.msra.mxu0 %v1042
        %1061 = vmatpush.msra.mxu0 %v1041
        %1062 = vmatpush.msra.mxu0 %v1040
        %1063 = vmatpush.msra.mxu0 %v1039
        %1064 = vmatmul.f32.gmra.mxu0 %v526
        %v1065 = vpop.f32.mrf.mxu0
        %v1066 = vadd.f32 %v1046, %v1065
        %1067 = vdwg.mxu0
        %s1068 = scalar_lea.vmem %s7, 96
        %v1069 = vld [vmem:[%s1068] sm:$0xff]
        %v1070 = vld [vmem:[%s1068 + $0x8] sm:$0xff]
        %v1071 = vld [vmem:[%s1068 + $0x10] sm:$0xff]
        %v1072 = vld [vmem:[%s1068 + $0x18] sm:$0xff]
        %s1073 = scalar_lea.vmem %s8, 3
        %v1074 = vld [vmem:[%s1073] sm:$0x1]
        %v1076 = vperm.slane %v1074, 0
        %1078 = vmatpush.msra.mxu0 0.0
        %1079 = vmatpush.msra.mxu0 0.0
        %1080 = vmatpush.msra.mxu0 0.0
        %1081 = vmatpush.msra.mxu0 0.0
        %1082 = vmatpush.msra.mxu0 0.0
        %1083 = vmatpush.msra.mxu0 0.0
        %1084 = vmatpush.msra.mxu0 0.0
        %1085 = vmatpush.msra.mxu0 0.0
        %1086 = vmatpush.msra.mxu0 0.0
        %1087 = vmatpush.msra.mxu0 0.0
        %1088 = vmatpush.msra.mxu0 0.0
        %1089 = vmatpush.msra.mxu0 0.0
        %1090 = vmatpush.msra.mxu0 %v1072
        %1091 = vmatpush.msra.mxu0 %v1071
        %1092 = vmatpush.msra.mxu0 %v1070
        %1093 = vmatpush.msra.mxu0 %v1069
        %1094 = vmatmul.f32.gmra.mxu0 %v557
        %v1095 = vpop.f32.mrf.mxu0
        %v1096 = vadd.f32 %v1076, %v1095
        %1097 = vdwg.mxu0
        %v1099 = vsel %vm579, %v1037, 0
        %v1102 = vsel %vm579, %v1066, 0
        %1104 = vmatpush.xpose.msra.mxu0 0.0
        %1105 = vmatpush.xpose.msra.mxu0 0.0
        %1106 = vmatpush.xpose.msra.mxu0 0.0
        %1107 = vmatpush.xpose.msra.mxu0 0.0
        %1108 = vmatpush.xpose.msra.mxu0 0.0
        %1109 = vmatpush.xpose.msra.mxu0 0.0
        %1110 = vmatpush.xpose.msra.mxu0 0.0
        %1111 = vmatpush.xpose.msra.mxu0 0.0
        %1112 = vmatpush.xpose.msra.mxu0 0.0
        %1113 = vmatpush.xpose.msra.mxu0 0.0
        %1114 = vmatpush.xpose.msra.mxu0 0.0
        %1115 = vmatpush.xpose.msra.mxu0 0.0
        %1116 = vmatpush.xpose.msra.mxu0 0.0
        %1117 = vmatpush.xpose.msra.mxu0 0.0
        %1118 = vmatpush.xpose.msra.mxu0 0.0
        %1119 = vmatpush.xpose.msra.mxu0 %v1102
        %1120 = vmatmul.f32.gmra.mxu0 %v1099
        %v1121 = vpop.f32.mrf.mxu0
        %v1122 = vadd.f32 0.0, %v1121
        %1123 = vdwg.mxu0
        %v1124 = vsub.f32 0.0, %v1122
        %v1125 = vmul.f32 %v1124, 1.442695
        %v1126 = vpow.pop %v1125
        %v1127 = vmul.f32 %v1126, 20.0
        %v1128 = vadd.f32 %v1127, 1.0
        %v1129 = vrcp.pop %v1128
        %s1130 = scalar_lea.vmem %s465, 24 [#allocation4]
        %1131 = vst.msk [vmem:[%s1130] sm:$0xff] %vm579, %v1129
        %v1133 = vsel %vm579, %v1129, 0
        %1135 = vmatpush.msra.mxu0 0.0
        %1136 = vmatpush.msra.mxu0 0.0
        %1137 = vmatpush.msra.mxu0 0.0
        %1138 = vmatpush.msra.mxu0 0.0
        %1139 = vmatpush.msra.mxu0 0.0
        %1140 = vmatpush.msra.mxu0 0.0
        %1141 = vmatpush.msra.mxu0 0.0
        %1142 = vmatpush.msra.mxu0 0.0
        %1143 = vmatpush.msra.mxu0 0.0
        %1144 = vmatpush.msra.mxu0 0.0
        %1145 = vmatpush.msra.mxu0 0.0
        %1146 = vmatpush.msra.mxu0 0.0
        %1147 = vmatpush.msra.mxu0 0.0
        %1148 = vmatpush.msra.mxu0 0.0
        %1149 = vmatpush.msra.mxu0 0.0
        %1150 = vmatpush.msra.mxu0 %v1096
        %1151 = vmatmul.f32.gmra.mxu0 %v1133
        %v1152 = vpop.f32.mrf.mxu0
        %v1153 = vadd.f32 0.0, %v1152
        %1154 = vdwg.mxu0
        %s1155 = scalar_lea.vmem %s9, 24
        %v1156 = vld [vmem:[%s1155] sm:$0xff]
        %v1158 = vsel %vm579, %v1153, 0
        %1160 = vmatpush.msra.mxu0 0.0
        %1161 = vmatpush.msra.mxu0 0.0
        %1162 = vmatpush.msra.mxu0 0.0
        %1163 = vmatpush.msra.mxu0 0.0
        %1164 = vmatpush.msra.mxu0 0.0
        %1165 = vmatpush.msra.mxu0 0.0
        %1166 = vmatpush.msra.mxu0 0.0
        %1167 = vmatpush.msra.mxu0 0.0
        %1168 = vmatpush.msra.mxu0 0.0
        %1169 = vmatpush.msra.mxu0 0.0
        %1170 = vmatpush.msra.mxu0 0.0
        %1171 = vmatpush.msra.mxu0 0.0
        %1172 = vmatpush.msra.mxu0 0.0
        %1173 = vmatpush.msra.mxu0 0.0
        %1174 = vmatpush.msra.mxu0 0.0
        %1175 = vmatpush.msra.mxu0 %v1156
        %1176 = vmatmul.f32.gmra.mxu0 %v1158
        %v1177 = vpop.f32.mrf.mxu0
        %v1178 = vadd.f32 0.0, %v1177
        %1179 = vdwg.mxu0
        %v1180 = vadd.f32 %v1006, %v1178
        %v1181 = vld [vmem:[%s10] sm:$0x1]
        %v1183 = vperm.slane %v1181, 0
        %v1185 = vadd.f32 %v1180, %v1183
        %1186 = vst.msk [vmem:[%s458] sm:$0xff] %vm492, %v1185
        %s1187 = sand.u32 %s300, 1
        %s1188 = scalar_lea.sflag [#allocation3], %s1187
        %s1189 = sand.u32 %s300, 1
        %s1190 = smul.addr %s1189, 8
        %s1191 = scalar_lea.vmem [#allocation2], %s1190
        %s1192 = sand.u32 %s328, 1
        %s1193 = scalar_lea.sflag [#allocation5], %s1192
        %s1194 = sand.u32 %s328, 1
        %s1195 = smul.addr %s1194, 32
        %s1196 = scalar_lea.vmem [#allocation4], %s1195
        // Predicated region
        $region65: #{tpu_custom_call.1} parent=63 // pred_check
          %p1197 = pneg %p310
        $region66: #{tpu_custom_call.1} parent=63 // pred_check_branch
          %1199 = sbr.rel (%p1197) target = $region68
        $region67: #{tpu_custom_call.1} parent=63 // pred_region
          %1201 = vsyncadd %s1188, 0
          %s1202 = sadd.s32 %s35, %s34
          %s1203 = smul.addr %s1202, 8
          %s1204 = scalar_lea.hbm %s11, %s1203
          %s1206 = sshll.u32 %s1191, 4
          %s1207 = int_to_ptr.vmem [resolvable:$true] %s1206
          %s1208 = sshll.u32 %s1204, 4
          %s1209 = int_to_ptr.hbm [resolvable:$true] %s1208
          %1211 = dma.vmem_to_hbm [thread:$0]  %s1207, 128, %s1209, %s1188
        $region68: #{tpu_custom_call.1} parent=63 // pred_fallthru
          _
        // Predicated region
        $region69: #{tpu_custom_call.1} parent=63 // pred_check
          %p1212 = pneg %p338
        $region70: #{tpu_custom_call.1} parent=63 // pred_check_branch
          %1214 = sbr.rel (%p1212) target = $region72
        $region71: #{tpu_custom_call.1} parent=63 // pred_region
          %1216 = vsyncadd %s1193, 0
          %s1217 = smul.addr %s34, 4
          %s1218 = sadd.s32 %s35, %s1217
          %s1219 = smul.addr %s1218, 8
          %s1220 = scalar_lea.hbm %s12, %s1219
          %s1221 = sshll.u32 %s1196, 4
          %s1222 = int_to_ptr.vmem [resolvable:$true] %s1221
          %s1223 = sshll.u32 %s1220, 4
          %s1224 = int_to_ptr.hbm [resolvable:$true] %s1223
          %1229 = dma.vmem_to_hbm [thread:$0]  %s1222, 512, %s1224, %s1193, 128, 128, 8
        $region72: #{tpu_custom_call.1} parent=63 // pred_fallthru
          _
      $region64: #{tpu_custom_call.1} parent=5 // pred_fallthru
        _
      %p1230 = scmp.le.s32.totalorder 2, %s25
      // Predicated region
      $region73: #{tpu_custom_call.1} parent=5 // pred_check
        %p1231 = pneg %p1230
      $region74: #{tpu_custom_call.1} parent=5 // pred_check_branch
        %1233 = sbr.rel (%p1231) target = $region76
      $region75: #{tpu_custom_call.1} parent=5 // pred_region
        %s1234 = ssub.s32 %s25, 2
        // Predicated region
        $region77: #{tpu_custom_call.1} parent=75 // pred_check
          %p1235 = pneg %p316
        $region78: #{tpu_custom_call.1} parent=75 // pred_check_branch
          %1237 = sbr.rel (%p1235) target = $region80
        $region79: #{tpu_custom_call.1} parent=75 // pred_region
          %s1238 = sand.u32 %s301, 1
          %s1239 = scalar_lea.sflag [#allocation3], %s1238
          %s1240 = sand.u32 %s301, 1
          %s1241 = smul.addr %s1240, 8
          %s1242 = scalar_lea.vmem [#allocation2], %s1241
          %1244 = dma.done %s1239, 128
        $region80: #{tpu_custom_call.1} parent=75 // pred_fallthru
          _
        // Predicated region
        $region81: #{tpu_custom_call.1} parent=75 // pred_check
          %p1245 = pneg %p344
        $region82: #{tpu_custom_call.1} parent=75 // pred_check_branch
          %1247 = sbr.rel (%p1245) target = $region84
        $region83: #{tpu_custom_call.1} parent=75 // pred_region
          %s1248 = sand.u32 %s329, 1
          %s1249 = scalar_lea.sflag [#allocation5], %s1248
          %s1250 = sand.u32 %s329, 1
          %s1251 = smul.addr %s1250, 32
          %s1252 = scalar_lea.vmem [#allocation4], %s1251
          %1254 = dma.done %s1249, 512
        $region84: #{tpu_custom_call.1} parent=75 // pred_fallthru
          _
      $region76: #{tpu_custom_call.1} parent=5 // pred_fallthru
        _
    $region6: #{tpu_custom_call.1} parent=1 // loop_footer
      %s29 = sadd.s32 1, %s25
    $region7: #{tpu_custom_call.1} parent=1 // loop_footer_branch
      %24 = sbr.rel target = $region3
    $region8: #{tpu_custom_call.1} parent=1 // loop_exit
      _
    %1255 = vsyncpa [#allocation3], 1
    %s1256 = scalar_lea.sflag [#allocation3], 1
    %1257 = vsyncpa %s1256, 1
    %1258 = vsyncpa [#allocation5], 1
    %s1259 = scalar_lea.sflag [#allocation5], 1
    %1260 = vsyncpa %s1259, 1

</llo_original>
